<compile_context>
chip_gen: v7x
topology: tpu7x:2x2x1
jax: 0.10.0
libtpu: 0.0.40
codegen_flags: <defaults>
</compile_context>

<pallas_src>
import jax
import jax.numpy as jnp
from jax.experimental import pallas as pl
from jax.experimental.pallas import tpu as pltpu

INPUT_DIM = 4
HIDDEN_DIM = 6
OUTPUT_DIM = 6
N_LAYERS = 2   # hard-wired to 2 layers, matching SongRNN's default


def song_rnn_kernel(x_ref, h_ref, w_ref, b_ref, out_ref, hn_ref):
    """Whole-sequence 2-layer Elman RNN + FC head, fully VMEM resident.

    x_ref  : (T, Bp, Dp)       time-major, zero-padded input
    h_ref  : (2, Bp, Hp)       initial hidden state per layer
    w_ref  : (Dp + 4*Hp, L)    packed [W_ih0; W_hh0; W_ih1; W_hh1; W_fc]
                               (each pre-transposed to (K, N), zero-padded)
    b_ref  : (3, Bp, L)        packed, pre-broadcast [b0; b1; b_fc]
    out_ref: (T, Bp, Op)       time-major output
    hn_ref : (2, Bp, Hp)       final hidden states
    """
    T, Bp, Dp = x_ref.shape
    Hp = hn_ref.shape[-1]
    Op = out_ref.shape[-1]

    # Static views/loads of the packed weight & bias buffers (zero-cost slices;
    # every row offset is a multiple of 128, every lane slice a multiple of 128).
    r = 0
    wih0 = w_ref[r:r + Dp, :Hp]; r += Dp
    whh0 = w_ref[r:r + Hp, :Hp]; r += Hp
    wih1 = w_ref[r:r + Hp, :Hp]; r += Hp
    whh1 = w_ref[r:r + Hp, :Hp]; r += Hp
    wfc  = w_ref[r:r + Hp, :Op]
    b0  = b_ref[0, :, :Hp]        # (Bp, Hp), already broadcast over batch
    b1  = b_ref[1, :, :Hp]
    bfc = b_ref[2, :, :Op]

    # ---- Hoisted layer-0 input projection: one (T*Bp, Dp) @ (Dp, Hp) matmul
    # for all steps; stays a traced value (no VMEM scratch round-trip).
    x_flat = x_ref[...].reshape(T * Bp, Dp)            # copy-free: T*Bp % 8 == 0
    xproj = (jnp.dot(x_flat, wih0, preferred_element_type=jnp.float32)
             .reshape(T, Bp, Hp) + b0[None])

    h0 = h_ref[0]
    h1 = h_ref[1]

    # ---- Fully unrolled recurrence.  Per step: one dependent K=128 matmul for
    # layer 0, two K=128 matmuls for layer 1 (split form, no concat), two tanh.
    h1_steps = []
    for t in range(T):
        h0 = jnp.tanh(xproj[t]
                      + jnp.dot(h0, whh0, preferred_element_type=jnp.float32))
        h1 = jnp.tanh(jnp.dot(h0, wih1, preferred_element_type=jnp.float32)
                      + jnp.dot(h1, whh1, preferred_element_type=jnp.float32)
                      + b1)
        h1_steps.append(h1)

    hn_ref[0] = h0
    hn_ref[1] = h1

    # ---- Hoisted FC head: one (T*Bp, Hp) @ (Hp, Op) matmul + one contiguous,
    # lane-dense store of the whole output.
    h1_all = jnp.concatenate(h1_steps, axis=0)          # (T*Bp, Hp), tile-aligned
    out = (jnp.dot(h1_all, wfc, preferred_element_type=jnp.float32)
           .reshape(T, Bp, Op) + bfc[None])
    out_ref[...] = out


def _round_up(n, m):
    return ((n + m - 1) // m) * m


def prepare_params(params, batch_size):
    """One-time packing of weights/biases into padded, kernel-ready buffers.

    Weights are pre-transposed to (K, N), zero-padded to (8,128) granularity,
    and stacked row-wise into a single buffer; biases are fused
    (b_ih + b_hh), pre-broadcast over the padded batch and stacked.  Reuse the
    returned dict across every forward call.
    """
    H = params["whh0"].shape[0]
    D = params["wih0"].shape[1]
    O = params["wfc"].shape[0]

    Bp = _round_up(max(batch_size, 1), 8)
    Dp = _round_up(D, 128)
    Hp = _round_up(H, 128)
    Op = _round_up(O, 128)
    L = max(Hp, Op)

    f32 = jnp.float32
    w_pack = jnp.zeros((Dp + 4 * Hp, L), f32)
    r = 0
    w_pack = w_pack.at[r:r + D, :H].set(params["wih0"].T.astype(f32)); r = Dp
    w_pack = w_pack.at[r:r + H, :H].set(params["whh0"].T.astype(f32)); r += Hp
    w_pack = w_pack.at[r:r + H, :H].set(params["wih1"].T.astype(f32)); r += Hp
    w_pack = w_pack.at[r:r + H, :H].set(params["whh1"].T.astype(f32)); r += Hp
    w_pack = w_pack.at[r:r + H, :O].set(params["wfc"].T.astype(f32))

    b0 = (params["bih0"] + params["bhh0"]).astype(f32)
    b1 = (params["bih1"] + params["bhh1"]).astype(f32)
    bfc = params["bfc"].astype(f32)
    b_pack = jnp.zeros((3, Bp, L), f32)
    b_pack = b_pack.at[0, :, :H].set(jnp.broadcast_to(b0, (Bp, H)))
    b_pack = b_pack.at[1, :, :H].set(jnp.broadcast_to(b1, (Bp, H)))
    b_pack = b_pack.at[2, :, :O].set(jnp.broadcast_to(bfc, (Bp, O)))

    return {
        "w_pack": jax.device_put(w_pack),
        "b_pack": jax.device_put(b_pack),
        "dims": {"B": batch_size, "Bp": Bp, "D": D, "Dp": Dp,
                 "H": H, "Hp": Hp, "O": O, "Op": Op},
    }


def song_rnn_forward(x, prepared, hidden=None):
    """Pallas equivalent of SongRNN.forward. x: (B, T, D_in) float32.

    Returns (output, hidden) with output (B, T, O) and hidden (2, B, H),
    matching the PyTorch module (batch_first output, layer-major hidden).
    """
    d = prepared["dims"]
    B, T, D = x.shape
    assert B == d["B"] and D == d["D"], "prepare_params dims mismatch"
    Bp, Dp, Hp, Op = d["Bp"], d["Dp"], d["Hp"], d["Op"]
    H, O = d["H"], d["O"]

    if hidden is None:
        hidden = jnp.zeros((N_LAYERS, B, H), jnp.float32)   # init_hidden

    # Per-call work is only input-dependent: time-major transpose + zero-pad of
    # x and the initial hidden state.  Zero padding keeps padded feature lanes
    # exactly 0 through the recurrence (tanh(0)=0, zero weight rows/cols).
    x_tm = jnp.zeros((T, Bp, Dp), jnp.float32)
    x_tm = x_tm.at[:, :B, :D].set(jnp.transpose(x, (1, 0, 2)).astype(jnp.float32))
    h_p = jnp.zeros((N_LAYERS, Bp, Hp), jnp.float32)
    h_p = h_p.at[:, :B, :H].set(hidden.astype(jnp.float32))

    vmem = pl.BlockSpec(memory_space=pltpu.MemorySpace.VMEM)

    out_tm, h_n = pl.pallas_call(
        song_rnn_kernel,
        out_shape=(jax.ShapeDtypeStruct((T, Bp, Op), jnp.float32),
                   jax.ShapeDtypeStruct((N_LAYERS, Bp, Hp), jnp.float32)),
        in_specs=[vmem, vmem, vmem, vmem],
        out_specs=(vmem, vmem),
    )(x_tm, h_p, prepared["w_pack"], prepared["b_pack"])

    out = jnp.transpose(out_tm, (1, 0, 2))[:B, :, :O]
    h_n = h_n[:, :B, :H]
    return out, h_n


def ref_forward(x, p, hidden):
    """Pure-JAX reference mirroring torch.nn.RNN(tanh) + Linear."""
    B, T, _ = x.shape
    h0, h1 = hidden[0], hidden[1]
    outs = []
    for t in range(T):
        xt = x[:, t, :]
        h0 = jnp.tanh(xt @ p["wih0"].T + p["bih0"] + h0 @ p["whh0"].T + p["bhh0"])
        h1 = jnp.tanh(h0 @ p["wih1"].T + p["bih1"] + h1 @ p["whh1"].T + p["bhh1"])
        outs.append(h1 @ p["wfc"].T + p["bfc"])
    return jnp.stack(outs, axis=1), jnp.stack([h0, h1], axis=0)


def init_params(key, input_dim, hidden_dim, output_dim):
    """Deterministic init mimicking PyTorch's U(-1/sqrt(H), 1/sqrt(H))."""
    ks = jax.random.split(key, 11)
    bound = 1.0 / jnp.sqrt(jnp.float32(hidden_dim))
    u = lambda k, shape: jax.random.uniform(
        k, shape, jnp.float32, minval=-bound, maxval=bound)
    return {
        "wih0": u(ks[0], (hidden_dim, input_dim)),
        "whh0": u(ks[1], (hidden_dim, hidden_dim)),
        "bih0": u(ks[2], (hidden_dim,)),
        "bhh0": u(ks[3], (hidden_dim,)),
        "wih1": u(ks[4], (hidden_dim, hidden_dim)),
        "whh1": u(ks[5], (hidden_dim, hidden_dim)),
        "bih1": u(ks[6], (hidden_dim,)),
        "bhh1": u(ks[7], (hidden_dim,)),
        "wfc":  u(ks[8], (output_dim, hidden_dim)),
        "bfc":  u(ks[9], (output_dim,)),
    }


if __name__ == "__main__":
    key = jax.random.PRNGKey(0)
    k_params, k_x = jax.random.split(key)

    B, T = 2, 8
    params = init_params(k_params, INPUT_DIM, HIDDEN_DIM, OUTPUT_DIM)
    x = jax.random.normal(k_x, (B, T, INPUT_DIM), jnp.float32)

    prepared = prepare_params(params, batch_size=B)       # one-time packing
    out, h_n = song_rnn_forward(x, prepared)              # hidden=None -> zeros
    jax.block_until_ready(out)
    jax.block_until_ready(h_n)

    out_ref, h_ref = ref_forward(x, params, jnp.zeros((N_LAYERS, B, HIDDEN_DIM)))
    assert out.shape == (B, T, OUTPUT_DIM)
    assert h_n.shape == (N_LAYERS, B, HIDDEN_DIM)
    assert jnp.allclose(out, out_ref, atol=1e-4), "output mismatch vs reference"
    assert jnp.allclose(h_n, h_ref, atol=1e-4), "hidden mismatch vs reference"

    print("KERNEL_OK")
</pallas_src>

<mosaic_0001>
module attributes {stable_mosaic.version = 11 : i64} {
  func.func @song_rnn_kernel(%arg0: memref<8x8x128xf32, #tpu.memory_space<vmem>>, %arg1: memref<2x8x128xf32, #tpu.memory_space<vmem>>, %arg2: memref<640x128xf32, #tpu.memory_space<vmem>>, %arg3: memref<3x8x128xf32, #tpu.memory_space<vmem>>, %arg4: memref<8x8x128xf32, #tpu.memory_space<vmem>>, %arg5: memref<2x8x128xf32, #tpu.memory_space<vmem>>) attributes {dimension_semantics = [], scalar_prefetch = 0 : i64, scratch_operands = 0 : i64, tpu.core_type = #tpu.core_type<tc>} {
    %c0 = arith.constant 0 : index
    %c0_0 = arith.constant 0 : index
    %0 = vector.load %arg2[%c0, %c0_0] : memref<640x128xf32, #tpu.memory_space<vmem>>, vector<128x128xf32>
    %c128 = arith.constant 128 : index
    %c0_1 = arith.constant 0 : index
    %1 = vector.load %arg2[%c128, %c0_1] : memref<640x128xf32, #tpu.memory_space<vmem>>, vector<128x128xf32>
    %c256 = arith.constant 256 : index
    %c0_2 = arith.constant 0 : index
    %2 = vector.load %arg2[%c256, %c0_2] : memref<640x128xf32, #tpu.memory_space<vmem>>, vector<128x128xf32>
    %c384 = arith.constant 384 : index
    %c0_3 = arith.constant 0 : index
    %3 = vector.load %arg2[%c384, %c0_3] : memref<640x128xf32, #tpu.memory_space<vmem>>, vector<128x128xf32>
    %c512 = arith.constant 512 : index
    %c0_4 = arith.constant 0 : index
    %4 = vector.load %arg2[%c512, %c0_4] : memref<640x128xf32, #tpu.memory_space<vmem>>, vector<128x128xf32>
    %c0_5 = arith.constant 0 : index
    %c0_6 = arith.constant 0 : index
    %c0_7 = arith.constant 0 : index
    %5 = vector.load %arg3[%c0_5, %c0_6, %c0_7] : memref<3x8x128xf32, #tpu.memory_space<vmem>>, vector<1x8x128xf32>
    %6 = vector.shape_cast %5 : vector<1x8x128xf32> to vector<8x128xf32>
    %c1 = arith.constant 1 : index
    %c0_8 = arith.constant 0 : index
    %c0_9 = arith.constant 0 : index
    %7 = vector.load %arg3[%c1, %c0_8, %c0_9] : memref<3x8x128xf32, #tpu.memory_space<vmem>>, vector<1x8x128xf32>
    %8 = vector.shape_cast %7 : vector<1x8x128xf32> to vector<8x128xf32>
    %c2 = arith.constant 2 : index
    %c0_10 = arith.constant 0 : index
    %c0_11 = arith.constant 0 : index
    %9 = vector.load %arg3[%c2, %c0_10, %c0_11] : memref<3x8x128xf32, #tpu.memory_space<vmem>>, vector<1x8x128xf32>
    %10 = vector.shape_cast %9 : vector<1x8x128xf32> to vector<8x128xf32>
    %c0_12 = arith.constant 0 : index
    %c0_13 = arith.constant 0 : index
    %c0_14 = arith.constant 0 : index
    %11 = vector.load %arg0[%c0_12, %c0_13, %c0_14] : memref<8x8x128xf32, #tpu.memory_space<vmem>>, vector<8x8x128xf32>
    %12 = vector.shape_cast %11 : vector<8x8x128xf32> to vector<64x128xf32>
    %cst = arith.constant dense<0.000000e+00> : vector<64x128xf32>
    %13 = tpu.matmul %12, %0, %cst {dimension_numbers = #tpu.dot_dimension_numbers<[1], [0], [0], [1], [0, 0, 1, 1], [], []>} : vector<64x128xf32>, vector<128x128xf32>, vector<64x128xf32> -> vector<64x128xf32>
    %14 = vector.shape_cast %13 : vector<64x128xf32> to vector<8x8x128xf32>
    %15 = vector.shape_cast %6 : vector<8x128xf32> to vector<1x8x128xf32>
    %16 = vector.broadcast %15 : vector<1x8x128xf32> to vector<8x8x128xf32>
    %17 = arith.addf %14, %16 : vector<8x8x128xf32>
    %c0_15 = arith.constant 0 : index
    %c0_16 = arith.constant 0 : index
    %c0_17 = arith.constant 0 : index
    %18 = vector.load %arg1[%c0_15, %c0_16, %c0_17] : memref<2x8x128xf32, #tpu.memory_space<vmem>>, vector<1x8x128xf32>
    %19 = vector.shape_cast %18 : vector<1x8x128xf32> to vector<8x128xf32>
    %c1_18 = arith.constant 1 : index
    %c0_19 = arith.constant 0 : index
    %c0_20 = arith.constant 0 : index
    %20 = vector.load %arg1[%c1_18, %c0_19, %c0_20] : memref<2x8x128xf32, #tpu.memory_space<vmem>>, vector<1x8x128xf32>
    %21 = vector.shape_cast %20 : vector<1x8x128xf32> to vector<8x128xf32>
    %22 = vector.extract_strided_slice %17 {offsets = [0, 0, 0], sizes = [1, 8, 128], strides = [1, 1, 1]} : vector<8x8x128xf32> to vector<1x8x128xf32>
    %23 = vector.shape_cast %22 : vector<1x8x128xf32> to vector<8x128xf32>
    %cst_21 = arith.constant dense<0.000000e+00> : vector<8x128xf32>
    %24 = tpu.matmul %19, %1, %cst_21 {dimension_numbers = #tpu.dot_dimension_numbers<[1], [0], [0], [1], [0, 0, 1, 1], [], []>} : vector<8x128xf32>, vector<128x128xf32>, vector<8x128xf32> -> vector<8x128xf32>
    %25 = arith.addf %23, %24 : vector<8x128xf32>
    %26 = math.tanh %25 : vector<8x128xf32>
    %cst_22 = arith.constant dense<0.000000e+00> : vector<8x128xf32>
    %27 = tpu.matmul %26, %2, %cst_22 {dimension_numbers = #tpu.dot_dimension_numbers<[1], [0], [0], [1], [0, 0, 1, 1], [], []>} : vector<8x128xf32>, vector<128x128xf32>, vector<8x128xf32> -> vector<8x128xf32>
    %cst_23 = arith.constant dense<0.000000e+00> : vector<8x128xf32>
    %28 = tpu.matmul %21, %3, %cst_23 {dimension_numbers = #tpu.dot_dimension_numbers<[1], [0], [0], [1], [0, 0, 1, 1], [], []>} : vector<8x128xf32>, vector<128x128xf32>, vector<8x128xf32> -> vector<8x128xf32>
    %29 = arith.addf %27, %28 : vector<8x128xf32>
    %30 = arith.addf %29, %8 : vector<8x128xf32>
    %31 = math.tanh %30 : vector<8x128xf32>
    %32 = vector.extract_strided_slice %17 {offsets = [1, 0, 0], sizes = [1, 8, 128], strides = [1, 1, 1]} : vector<8x8x128xf32> to vector<1x8x128xf32>
    %33 = vector.shape_cast %32 : vector<1x8x128xf32> to vector<8x128xf32>
    %cst_24 = arith.constant dense<0.000000e+00> : vector<8x128xf32>
    %34 = tpu.matmul %26, %1, %cst_24 {dimension_numbers = #tpu.dot_dimension_numbers<[1], [0], [0], [1], [0, 0, 1, 1], [], []>} : vector<8x128xf32>, vector<128x128xf32>, vector<8x128xf32> -> vector<8x128xf32>
    %35 = arith.addf %33, %34 : vector<8x128xf32>
    %36 = math.tanh %35 : vector<8x128xf32>
    %cst_25 = arith.constant dense<0.000000e+00> : vector<8x128xf32>
    %37 = tpu.matmul %36, %2, %cst_25 {dimension_numbers = #tpu.dot_dimension_numbers<[1], [0], [0], [1], [0, 0, 1, 1], [], []>} : vector<8x128xf32>, vector<128x128xf32>, vector<8x128xf32> -> vector<8x128xf32>
    %cst_26 = arith.constant dense<0.000000e+00> : vector<8x128xf32>
    %38 = tpu.matmul %31, %3, %cst_26 {dimension_numbers = #tpu.dot_dimension_numbers<[1], [0], [0], [1], [0, 0, 1, 1], [], []>} : vector<8x128xf32>, vector<128x128xf32>, vector<8x128xf32> -> vector<8x128xf32>
    %39 = arith.addf %37, %38 : vector<8x128xf32>
    %40 = arith.addf %39, %8 : vector<8x128xf32>
    %41 = math.tanh %40 : vector<8x128xf32>
    %42 = vector.extract_strided_slice %17 {offsets = [2, 0, 0], sizes = [1, 8, 128], strides = [1, 1, 1]} : vector<8x8x128xf32> to vector<1x8x128xf32>
    %43 = vector.shape_cast %42 : vector<1x8x128xf32> to vector<8x128xf32>
    %cst_27 = arith.constant dense<0.000000e+00> : vector<8x128xf32>
    %44 = tpu.matmul %36, %1, %cst_27 {dimension_numbers = #tpu.dot_dimension_numbers<[1], [0], [0], [1], [0, 0, 1, 1], [], []>} : vector<8x128xf32>, vector<128x128xf32>, vector<8x128xf32> -> vector<8x128xf32>
    %45 = arith.addf %43, %44 : vector<8x128xf32>
    %46 = math.tanh %45 : vector<8x128xf32>
    %cst_28 = arith.constant dense<0.000000e+00> : vector<8x128xf32>
    %47 = tpu.matmul %46, %2, %cst_28 {dimension_numbers = #tpu.dot_dimension_numbers<[1], [0], [0], [1], [0, 0, 1, 1], [], []>} : vector<8x128xf32>, vector<128x128xf32>, vector<8x128xf32> -> vector<8x128xf32>
    %cst_29 = arith.constant dense<0.000000e+00> : vector<8x128xf32>
    %48 = tpu.matmul %41, %3, %cst_29 {dimension_numbers = #tpu.dot_dimension_numbers<[1], [0], [0], [1], [0, 0, 1, 1], [], []>} : vector<8x128xf32>, vector<128x128xf32>, vector<8x128xf32> -> vector<8x128xf32>
    %49 = arith.addf %47, %48 : vector<8x128xf32>
    %50 = arith.addf %49, %8 : vector<8x128xf32>
    %51 = math.tanh %50 : vector<8x128xf32>
    %52 = vector.extract_strided_slice %17 {offsets = [3, 0, 0], sizes = [1, 8, 128], strides = [1, 1, 1]} : vector<8x8x128xf32> to vector<1x8x128xf32>
    %53 = vector.shape_cast %52 : vector<1x8x128xf32> to vector<8x128xf32>
    %cst_30 = arith.constant dense<0.000000e+00> : vector<8x128xf32>
    %54 = tpu.matmul %46, %1, %cst_30 {dimension_numbers = #tpu.dot_dimension_numbers<[1], [0], [0], [1], [0, 0, 1, 1], [], []>} : vector<8x128xf32>, vector<128x128xf32>, vector<8x128xf32> -> vector<8x128xf32>
    %55 = arith.addf %53, %54 : vector<8x128xf32>
    %56 = math.tanh %55 : vector<8x128xf32>
    %cst_31 = arith.constant dense<0.000000e+00> : vector<8x128xf32>
    %57 = tpu.matmul %56, %2, %cst_31 {dimension_numbers = #tpu.dot_dimension_numbers<[1], [0], [0], [1], [0, 0, 1, 1], [], []>} : vector<8x128xf32>, vector<128x128xf32>, vector<8x128xf32> -> vector<8x128xf32>
    %cst_32 = arith.constant dense<0.000000e+00> : vector<8x128xf32>
    %58 = tpu.matmul %51, %3, %cst_32 {dimension_numbers = #tpu.dot_dimension_numbers<[1], [0], [0], [1], [0, 0, 1, 1], [], []>} : vector<8x128xf32>, vector<128x128xf32>, vector<8x128xf32> -> vector<8x128xf32>
    %59 = arith.addf %57, %58 : vector<8x128xf32>
    %60 = arith.addf %59, %8 : vector<8x128xf32>
    %61 = math.tanh %60 : vector<8x128xf32>
    %62 = vector.extract_strided_slice %17 {offsets = [4, 0, 0], sizes = [1, 8, 128], strides = [1, 1, 1]} : vector<8x8x128xf32> to vector<1x8x128xf32>
    %63 = vector.shape_cast %62 : vector<1x8x128xf32> to vector<8x128xf32>
    %cst_33 = arith.constant dense<0.000000e+00> : vector<8x128xf32>
    %64 = tpu.matmul %56, %1, %cst_33 {dimension_numbers = #tpu.dot_dimension_numbers<[1], [0], [0], [1], [0, 0, 1, 1], [], []>} : vector<8x128xf32>, vector<128x128xf32>, vector<8x128xf32> -> vector<8x128xf32>
    %65 = arith.addf %63, %64 : vector<8x128xf32>
    %66 = math.tanh %65 : vector<8x128xf32>
    %cst_34 = arith.constant dense<0.000000e+00> : vector<8x128xf32>
    %67 = tpu.matmul %66, %2, %cst_34 {dimension_numbers = #tpu.dot_dimension_numbers<[1], [0], [0], [1], [0, 0, 1, 1], [], []>} : vector<8x128xf32>, vector<128x128xf32>, vector<8x128xf32> -> vector<8x128xf32>
    %cst_35 = arith.constant dense<0.000000e+00> : vector<8x128xf32>
    %68 = tpu.matmul %61, %3, %cst_35 {dimension_numbers = #tpu.dot_dimension_numbers<[1], [0], [0], [1], [0, 0, 1, 1], [], []>} : vector<8x128xf32>, vector<128x128xf32>, vector<8x128xf32> -> vector<8x128xf32>
    %69 = arith.addf %67, %68 : vector<8x128xf32>
    %70 = arith.addf %69, %8 : vector<8x128xf32>
    %71 = math.tanh %70 : vector<8x128xf32>
    %72 = vector.extract_strided_slice %17 {offsets = [5, 0, 0], sizes = [1, 8, 128], strides = [1, 1, 1]} : vector<8x8x128xf32> to vector<1x8x128xf32>
    %73 = vector.shape_cast %72 : vector<1x8x128xf32> to vector<8x128xf32>
    %cst_36 = arith.constant dense<0.000000e+00> : vector<8x128xf32>
    %74 = tpu.matmul %66, %1, %cst_36 {dimension_numbers = #tpu.dot_dimension_numbers<[1], [0], [0], [1], [0, 0, 1, 1], [], []>} : vector<8x128xf32>, vector<128x128xf32>, vector<8x128xf32> -> vector<8x128xf32>
    %75 = arith.addf %73, %74 : vector<8x128xf32>
    %76 = math.tanh %75 : vector<8x128xf32>
    %cst_37 = arith.constant dense<0.000000e+00> : vector<8x128xf32>
    %77 = tpu.matmul %76, %2, %cst_37 {dimension_numbers = #tpu.dot_dimension_numbers<[1], [0], [0], [1], [0, 0, 1, 1], [], []>} : vector<8x128xf32>, vector<128x128xf32>, vector<8x128xf32> -> vector<8x128xf32>
    %cst_38 = arith.constant dense<0.000000e+00> : vector<8x128xf32>
    %78 = tpu.matmul %71, %3, %cst_38 {dimension_numbers = #tpu.dot_dimension_numbers<[1], [0], [0], [1], [0, 0, 1, 1], [], []>} : vector<8x128xf32>, vector<128x128xf32>, vector<8x128xf32> -> vector<8x128xf32>
    %79 = arith.addf %77, %78 : vector<8x128xf32>
    %80 = arith.addf %79, %8 : vector<8x128xf32>
    %81 = math.tanh %80 : vector<8x128xf32>
    %82 = vector.extract_strided_slice %17 {offsets = [6, 0, 0], sizes = [1, 8, 128], strides = [1, 1, 1]} : vector<8x8x128xf32> to vector<1x8x128xf32>
    %83 = vector.shape_cast %82 : vector<1x8x128xf32> to vector<8x128xf32>
    %cst_39 = arith.constant dense<0.000000e+00> : vector<8x128xf32>
    %84 = tpu.matmul %76, %1, %cst_39 {dimension_numbers = #tpu.dot_dimension_numbers<[1], [0], [0], [1], [0, 0, 1, 1], [], []>} : vector<8x128xf32>, vector<128x128xf32>, vector<8x128xf32> -> vector<8x128xf32>
    %85 = arith.addf %83, %84 : vector<8x128xf32>
    %86 = math.tanh %85 : vector<8x128xf32>
    %cst_40 = arith.constant dense<0.000000e+00> : vector<8x128xf32>
    %87 = tpu.matmul %86, %2, %cst_40 {dimension_numbers = #tpu.dot_dimension_numbers<[1], [0], [0], [1], [0, 0, 1, 1], [], []>} : vector<8x128xf32>, vector<128x128xf32>, vector<8x128xf32> -> vector<8x128xf32>
    %cst_41 = arith.constant dense<0.000000e+00> : vector<8x128xf32>
    %88 = tpu.matmul %81, %3, %cst_41 {dimension_numbers = #tpu.dot_dimension_numbers<[1], [0], [0], [1], [0, 0, 1, 1], [], []>} : vector<8x128xf32>, vector<128x128xf32>, vector<8x128xf32> -> vector<8x128xf32>
    %89 = arith.addf %87, %88 : vector<8x128xf32>
    %90 = arith.addf %89, %8 : vector<8x128xf32>
    %91 = math.tanh %90 : vector<8x128xf32>
    %92 = vector.extract_strided_slice %17 {offsets = [7, 0, 0], sizes = [1, 8, 128], strides = [1, 1, 1]} : vector<8x8x128xf32> to vector<1x8x128xf32>
    %93 = vector.shape_cast %92 : vector<1x8x128xf32> to vector<8x128xf32>
    %cst_42 = arith.constant dense<0.000000e+00> : vector<8x128xf32>
    %94 = tpu.matmul %86, %1, %cst_42 {dimension_numbers = #tpu.dot_dimension_numbers<[1], [0], [0], [1], [0, 0, 1, 1], [], []>} : vector<8x128xf32>, vector<128x128xf32>, vector<8x128xf32> -> vector<8x128xf32>
    %95 = arith.addf %93, %94 : vector<8x128xf32>
    %96 = math.tanh %95 : vector<8x128xf32>
    %cst_43 = arith.constant dense<0.000000e+00> : vector<8x128xf32>
    %97 = tpu.matmul %96, %2, %cst_43 {dimension_numbers = #tpu.dot_dimension_numbers<[1], [0], [0], [1], [0, 0, 1, 1], [], []>} : vector<8x128xf32>, vector<128x128xf32>, vector<8x128xf32> -> vector<8x128xf32>
    %cst_44 = arith.constant dense<0.000000e+00> : vector<8x128xf32>
    %98 = tpu.matmul %91, %3, %cst_44 {dimension_numbers = #tpu.dot_dimension_numbers<[1], [0], [0], [1], [0, 0, 1, 1], [], []>} : vector<8x128xf32>, vector<128x128xf32>, vector<8x128xf32> -> vector<8x128xf32>
    %99 = arith.addf %97, %98 : vector<8x128xf32>
    %100 = arith.addf %99, %8 : vector<8x128xf32>
    %101 = math.tanh %100 : vector<8x128xf32>
    %c0_45 = arith.constant 0 : index
    %c0_46 = arith.constant 0 : index
    %c0_47 = arith.constant 0 : index
    %102 = vector.load %arg5[%c0_45, %c0_46, %c0_47] : memref<2x8x128xf32, #tpu.memory_space<vmem>>, vector<1x8x128xf32>
    %103 = vector.shape_cast %102 : vector<1x8x128xf32> to vector<8x128xf32>
    %104 = vector.shape_cast %96 : vector<8x128xf32> to vector<1x8x128xf32>
    tpu.vector_store %arg5[%c0_45, %c0_46, %c0_47], %104 {strides = array<i32>} : memref<2x8x128xf32, #tpu.memory_space<vmem>>, vector<1x8x128xf32>,
    %c1_48 = arith.constant 1 : index
    %c0_49 = arith.constant 0 : index
    %c0_50 = arith.constant 0 : index
    %105 = vector.load %arg5[%c1_48, %c0_49, %c0_50] : memref<2x8x128xf32, #tpu.memory_space<vmem>>, vector<1x8x128xf32>
    %106 = vector.shape_cast %105 : vector<1x8x128xf32> to vector<8x128xf32>
    %107 = vector.shape_cast %101 : vector<8x128xf32> to vector<1x8x128xf32>
    tpu.vector_store %arg5[%c1_48, %c0_49, %c0_50], %107 {strides = array<i32>} : memref<2x8x128xf32, #tpu.memory_space<vmem>>, vector<1x8x128xf32>,
    %108 = tpu.concatenate %31, %41, %51, %61, %71, %81, %91, %101 in 0 : vector<8x128xf32>, vector<8x128xf32>, vector<8x128xf32>, vector<8x128xf32>, vector<8x128xf32>, vector<8x128xf32>, vector<8x128xf32>, vector<8x128xf32> -> vector<64x128xf32>
    %cst_51 = arith.constant dense<0.000000e+00> : vector<64x128xf32>
    %109 = tpu.matmul %108, %4, %cst_51 {dimension_numbers = #tpu.dot_dimension_numbers<[1], [0], [0], [1], [0, 0, 1, 1], [], []>} : vector<64x128xf32>, vector<128x128xf32>, vector<64x128xf32> -> vector<64x128xf32>
    %110 = vector.shape_cast %109 : vector<64x128xf32> to vector<8x8x128xf32>
    %111 = vector.shape_cast %10 : vector<8x128xf32> to vector<1x8x128xf32>
    %112 = vector.broadcast %111 : vector<1x8x128xf32> to vector<8x8x128xf32>
    %113 = arith.addf %110, %112 : vector<8x8x128xf32>
    %c0_52 = arith.constant 0 : index
    %c0_53 = arith.constant 0 : index
    %c0_54 = arith.constant 0 : index
    %114 = vector.load %arg4[%c0_52, %c0_53, %c0_54] : memref<8x8x128xf32, #tpu.memory_space<vmem>>, vector<8x8x128xf32>
    tpu.vector_store %arg4[%c0_52, %c0_53, %c0_54], %113 {strides = array<i32>} : memref<8x8x128xf32, #tpu.memory_space<vmem>>, vector<8x8x128xf32>,
    return
  }
}

</mosaic_0001>

<llo_original>
// kernel: tpu_custom_call.1
$region0: #{tpu_custom_call.1}
  #allocation0 [shape = 'u32[]', space=smem, size = 0x4, offset = 0x4, fixed_abs, tag = 'smem constant byte address 0x4 - core index']
  #allocation1 [shape = 'u32[144,128]{1,0:T(1,128)}', space=vmem, size = 0x12000, scoped, tag = 'internal scratch']
  %s0 = inlined_call_operand.hbm [shape: f32[8,8,128], index: 0, kind: input, shape index: {}]
  %s1 = inlined_call_operand.hbm [shape: f32[2,8,128], index: 1, kind: input, shape index: {}]
  %s2 = inlined_call_operand.hbm [shape: f32[640,128], index: 2, kind: input, shape index: {}]
  %s3 = inlined_call_operand.hbm [shape: f32[3,8,128], index: 3, kind: input, shape index: {}]
  %s4 = inlined_call_operand.hbm [shape: f32[8,8,128], index: 4, kind: output, shape index: {0}]
  %s5 = inlined_call_operand.hbm [shape: f32[2,8,128], index: 5, kind: output, shape index: {1}]
  %6 = xla_tuple %s4, %s5
  %s7 = sld [smem:[#allocation0]]
  $region50: #{tpu_custom_call.1} parent=0
    _
  %s9 = ssub.s32 1, %s7
  %s10 = scalar_select 0, %s9, %s7
  $region1: #{tpu_custom_call.1} parent=0
    #allocation2 [shape = 'u8[32768]{0}', space=vmem, size = 0x8000, scoped, tag = 'input window, operand 0, single buffered']
    #allocation3 [shape = 's32[1]{0}', space=sflag, size = 0x4, scoped, tag = 'scoped memory for tpu_custom_call.1']
    #allocation4 [shape = 's32[1]{0}', space=sflag, size = 0x4, scoped, tag = 'scoped memory for tpu_custom_call.1']
    #allocation5 [shape = 'u8[8192]{0}', space=vmem, size = 0x2000, scoped, tag = 'input window, operand 1, single buffered']
    #allocation6 [shape = 's32[1]{0}', space=sflag, size = 0x4, scoped, tag = 'scoped memory for tpu_custom_call.1']
    #allocation7 [shape = 'u8[327680]{0}', space=vmem, size = 0x50000, scoped, tag = 'input window, operand 2, single buffered']
    #allocation8 [shape = 'u8[12288]{0}', space=vmem, size = 0x3000, scoped, tag = 'input window, operand 3, single buffered']
    #allocation9 [shape = 's32[1]{0}', space=sflag, size = 0x4, scoped, tag = 'scoped memory for tpu_custom_call.1']
    #allocation10 [shape = 'u8[32768]{0}', space=vmem, size = 0x8000, scoped, tag = 'output window, operand 0, single buffered']
    #allocation11 [shape = 'u8[8192]{0}', space=vmem, size = 0x2000, scoped, tag = 'output window, operand 1, single buffered']
    #allocation12 [shape = 's32[1]{0}', space=sflag, size = 0x4, scoped, tag = 'scoped memory for tpu_custom_call.1']
    %11 = vsyncpa [#allocation3], 0
    %12 = vsyncpa [#allocation6], 0
    %13 = vsyncpa [#allocation9], 0
    %14 = vsyncpa [#allocation4], 0
    %15 = vsyncpa [#allocation12], 0
    // Predicated region
    $region2: #{tpu_custom_call.1} parent=1 // pred_check
      _
    $region3: #{tpu_custom_call.1} parent=1 // pred_check_branch
      %17 = sbr.rel (0) target = $region5
    $region4: #{tpu_custom_call.1} parent=1 // pred_region
      %s19 = ssub.s32 1024, 1024
      %20 = vsyncadd [#allocation3], %s19
      %s21 = sshll.u32 [#allocation2], 4
      %s22 = int_to_ptr.vmem [resolvable:$true] %s21
      %27 = dma.hbm_to_vmem [thread:$0]  %s0, 1024, %s22, [#allocation3], 128, 128, 8
    $region5: #{tpu_custom_call.1} parent=1 // pred_fallthru
      _
    // Predicated region
    $region6: #{tpu_custom_call.1} parent=1 // pred_check
      _
    $region7: #{tpu_custom_call.1} parent=1 // pred_check_branch
      %29 = sbr.rel (0) target = $region9
    $region8: #{tpu_custom_call.1} parent=1 // pred_region
      %s31 = ssub.s32 256, 256
      %32 = vsyncadd [#allocation6], %s31
      %s33 = sshll.u32 [#allocation5], 4
      %s34 = int_to_ptr.vmem [resolvable:$true] %s33
      %39 = dma.hbm_to_vmem [thread:$0]  %s1, 256, %s34, [#allocation6], 128, 128, 8
    $region9: #{tpu_custom_call.1} parent=1 // pred_fallthru
      _
    // Predicated region
    $region10: #{tpu_custom_call.1} parent=1 // pred_check
      _
    $region11: #{tpu_custom_call.1} parent=1 // pred_check_branch
      %41 = sbr.rel (0) target = $region13
    $region12: #{tpu_custom_call.1} parent=1 // pred_region
      %s43 = ssub.s32 10240, 10240
      %44 = vsyncadd [#allocation6], %s43
      %s45 = sshll.u32 [#allocation7], 4
      %s46 = int_to_ptr.vmem [resolvable:$true] %s45
      %51 = dma.hbm_to_vmem [thread:$0]  %s2, 10240, %s46, [#allocation6], 128, 128, 8
    $region13: #{tpu_custom_call.1} parent=1 // pred_fallthru
      _
    // Predicated region
    $region14: #{tpu_custom_call.1} parent=1 // pred_check
      _
    $region15: #{tpu_custom_call.1} parent=1 // pred_check_branch
      %53 = sbr.rel (0) target = $region17
    $region16: #{tpu_custom_call.1} parent=1 // pred_region
      %s55 = ssub.s32 384, 384
      %56 = vsyncadd [#allocation9], %s55
      %s57 = sshll.u32 [#allocation8], 4
      %s58 = int_to_ptr.vmem [resolvable:$true] %s57
      %63 = dma.hbm_to_vmem [thread:$0]  %s3, 384, %s58, [#allocation9], 128, 128, 8
    $region17: #{tpu_custom_call.1} parent=1 // pred_fallthru
      _
    // Predicated region
    $region18: #{tpu_custom_call.1} parent=1 // pred_check
      _
    $region19: #{tpu_custom_call.1} parent=1 // pred_check_branch
      %65 = sbr.rel (0) target = $region21
    $region20: #{tpu_custom_call.1} parent=1 // pred_region
      %66 = dma.done [#allocation3], 1024
    $region21: #{tpu_custom_call.1} parent=1 // pred_fallthru
      _
    // Predicated region
    $region22: #{tpu_custom_call.1} parent=1 // pred_check
      _
    $region23: #{tpu_custom_call.1} parent=1 // pred_check_branch
      %68 = sbr.rel (0) target = $region25
    $region24: #{tpu_custom_call.1} parent=1 // pred_region
      %69 = dma.done [#allocation6], 256
    $region25: #{tpu_custom_call.1} parent=1 // pred_fallthru
      _
    // Predicated region
    $region26: #{tpu_custom_call.1} parent=1 // pred_check
      _
    $region27: #{tpu_custom_call.1} parent=1 // pred_check_branch
      %71 = sbr.rel (0) target = $region29
    $region28: #{tpu_custom_call.1} parent=1 // pred_region
      %72 = dma.done [#allocation6], 10240
    $region29: #{tpu_custom_call.1} parent=1 // pred_fallthru
      _
    // Predicated region
    $region30: #{tpu_custom_call.1} parent=1 // pred_check
      _
    $region31: #{tpu_custom_call.1} parent=1 // pred_check_branch
      %74 = sbr.rel (0) target = $region33
    $region32: #{tpu_custom_call.1} parent=1 // pred_region
      %75 = dma.done [#allocation9], 384
    $region33: #{tpu_custom_call.1} parent=1 // pred_fallthru
      _
    %v76 = vld [vmem:[#allocation7] sm:$0xff]
    %v77 = vld [vmem:[#allocation7 + $0x8] sm:$0xff]
    %v78 = vld [vmem:[#allocation7 + $0x10] sm:$0xff]
    %v79 = vld [vmem:[#allocation7 + $0x18] sm:$0xff]
    %v80 = vld [vmem:[#allocation7 + $0x20] sm:$0xff]
    %v81 = vld [vmem:[#allocation7 + $0x28] sm:$0xff]
    %v82 = vld [vmem:[#allocation7 + $0x30] sm:$0xff]
    %v83 = vld [vmem:[#allocation7 + $0x38] sm:$0xff]
    %v84 = vld [vmem:[#allocation7 + $0x40] sm:$0xff]
    %v85 = vld [vmem:[#allocation7 + $0x48] sm:$0xff]
    %v86 = vld [vmem:[#allocation7 + $0x50] sm:$0xff]
    %v87 = vld [vmem:[#allocation7 + $0x58] sm:$0xff]
    %v88 = vld [vmem:[#allocation7 + $0x60] sm:$0xff]
    %v89 = vld [vmem:[#allocation7 + $0x68] sm:$0xff]
    %v90 = vld [vmem:[#allocation7 + $0x70] sm:$0xff]
    %v91 = vld [vmem:[#allocation7 + $0x78] sm:$0xff]
    %v92 = vld [vmem:[#allocation7 + $0x80] sm:$0xff]
    %v93 = vld [vmem:[#allocation7 + $0x88] sm:$0xff]
    %v94 = vld [vmem:[#allocation7 + $0x90] sm:$0xff]
    %v95 = vld [vmem:[#allocation7 + $0x98] sm:$0xff]
    %v96 = vld [vmem:[#allocation7 + $0xa0] sm:$0xff]
    %v97 = vld [vmem:[#allocation7 + $0xa8] sm:$0xff]
    %v98 = vld [vmem:[#allocation7 + $0xb0] sm:$0xff]
    %v99 = vld [vmem:[#allocation7 + $0xb8] sm:$0xff]
    %v100 = vld [vmem:[#allocation7 + $0xc0] sm:$0xff]
    %v101 = vld [vmem:[#allocation7 + $0xc8] sm:$0xff]
    %v102 = vld [vmem:[#allocation7 + $0xd0] sm:$0xff]
    %v103 = vld [vmem:[#allocation7 + $0xd8] sm:$0xff]
    %v104 = vld [vmem:[#allocation7 + $0xe0] sm:$0xff]
    %v105 = vld [vmem:[#allocation7 + $0xe8] sm:$0xff]
    %v106 = vld [vmem:[#allocation7 + $0xf0] sm:$0xff]
    %v107 = vld [vmem:[#allocation7 + $0xf8] sm:$0xff]
    %v108 = vld [vmem:[#allocation7 + $0x100] sm:$0xff]
    %v109 = vld [vmem:[#allocation7 + $0x108] sm:$0xff]
    %v110 = vld [vmem:[#allocation7 + $0x110] sm:$0xff]
    %v111 = vld [vmem:[#allocation7 + $0x118] sm:$0xff]
    %v112 = vld [vmem:[#allocation7 + $0x120] sm:$0xff]
    %v113 = vld [vmem:[#allocation7 + $0x128] sm:$0xff]
    %v114 = vld [vmem:[#allocation7 + $0x130] sm:$0xff]
    %v115 = vld [vmem:[#allocation7 + $0x138] sm:$0xff]
    %v116 = vld [vmem:[#allocation7 + $0x140] sm:$0xff]
    %v117 = vld [vmem:[#allocation7 + $0x148] sm:$0xff]
    %v118 = vld [vmem:[#allocation7 + $0x150] sm:$0xff]
    %v119 = vld [vmem:[#allocation7 + $0x158] sm:$0xff]
    %v120 = vld [vmem:[#allocation7 + $0x160] sm:$0xff]
    %v121 = vld [vmem:[#allocation7 + $0x168] sm:$0xff]
    %v122 = vld [vmem:[#allocation7 + $0x170] sm:$0xff]
    %v123 = vld [vmem:[#allocation7 + $0x178] sm:$0xff]
    %v124 = vld [vmem:[#allocation7 + $0x180] sm:$0xff]
    %v125 = vld [vmem:[#allocation7 + $0x188] sm:$0xff]
    %v126 = vld [vmem:[#allocation7 + $0x190] sm:$0xff]
    %v127 = vld [vmem:[#allocation7 + $0x198] sm:$0xff]
    %v128 = vld [vmem:[#allocation7 + $0x1a0] sm:$0xff]
    %v129 = vld [vmem:[#allocation7 + $0x1a8] sm:$0xff]
    %v130 = vld [vmem:[#allocation7 + $0x1b0] sm:$0xff]
    %v131 = vld [vmem:[#allocation7 + $0x1b8] sm:$0xff]
    %v132 = vld [vmem:[#allocation7 + $0x1c0] sm:$0xff]
    %v133 = vld [vmem:[#allocation7 + $0x1c8] sm:$0xff]
    %v134 = vld [vmem:[#allocation7 + $0x1d0] sm:$0xff]
    %v135 = vld [vmem:[#allocation7 + $0x1d8] sm:$0xff]
    %v136 = vld [vmem:[#allocation7 + $0x1e0] sm:$0xff]
    %v137 = vld [vmem:[#allocation7 + $0x1e8] sm:$0xff]
    %v138 = vld [vmem:[#allocation7 + $0x1f0] sm:$0xff]
    %v139 = vld [vmem:[#allocation7 + $0x1f8] sm:$0xff]
    %v140 = vld [vmem:[#allocation7 + $0x200] sm:$0xff]
    %v141 = vld [vmem:[#allocation7 + $0x208] sm:$0xff]
    %v142 = vld [vmem:[#allocation7 + $0x210] sm:$0xff]
    %v143 = vld [vmem:[#allocation7 + $0x218] sm:$0xff]
    %v144 = vld [vmem:[#allocation7 + $0x220] sm:$0xff]
    %v145 = vld [vmem:[#allocation7 + $0x228] sm:$0xff]
    %v146 = vld [vmem:[#allocation7 + $0x230] sm:$0xff]
    %v147 = vld [vmem:[#allocation7 + $0x238] sm:$0xff]
    %v148 = vld [vmem:[#allocation7 + $0x240] sm:$0xff]
    %v149 = vld [vmem:[#allocation7 + $0x248] sm:$0xff]
    %v150 = vld [vmem:[#allocation7 + $0x250] sm:$0xff]
    %v151 = vld [vmem:[#allocation7 + $0x258] sm:$0xff]
    %v152 = vld [vmem:[#allocation7 + $0x260] sm:$0xff]
    %v153 = vld [vmem:[#allocation7 + $0x268] sm:$0xff]
    %v154 = vld [vmem:[#allocation7 + $0x270] sm:$0xff]
    %v155 = vld [vmem:[#allocation7 + $0x278] sm:$0xff]
    %v156 = vld [vmem:[#allocation8] sm:$0xff]
    %s157 = scalar_lea.vmem [#allocation8], 8
    %v158 = vld [vmem:[%s157] sm:$0xff]
    %s159 = scalar_lea.vmem [#allocation8], 16
    %v160 = vld [vmem:[%s159] sm:$0xff]
    %v161 = vld [vmem:[#allocation2] sm:$0xff]
    %v162 = vld [vmem:[#allocation2 + $0x8] sm:$0xff]
    %v163 = vld [vmem:[#allocation2 + $0x10] sm:$0xff]
    %v164 = vld [vmem:[#allocation2 + $0x18] sm:$0xff]
    %v165 = vld [vmem:[#allocation2 + $0x20] sm:$0xff]
    %v166 = vld [vmem:[#allocation2 + $0x28] sm:$0xff]
    %v167 = vld [vmem:[#allocation2 + $0x30] sm:$0xff]
    %v168 = vld [vmem:[#allocation2 + $0x38] sm:$0xff]
    %169 = vmatprep.subr.mxu0 0.0
    %170 = vmatpush1.msra.mxu0 %v76
    %171 = vmatprep.subr.mxu0 0.0
    %172 = vmatpush1.msra.mxu0 %v77
    %173 = vmatprep.subr.mxu0 0.0
    %174 = vmatpush1.msra.mxu0 %v78
    %175 = vmatprep.subr.mxu0 0.0
    %176 = vmatpush1.msra.mxu0 %v79
    %177 = vmatprep.subr.mxu0 0.0
    %178 = vmatpush1.msra.mxu0 %v80
    %179 = vmatprep.subr.mxu0 0.0
    %180 = vmatpush1.msra.mxu0 %v81
    %181 = vmatprep.subr.mxu0 0.0
    %182 = vmatpush1.msra.mxu0 %v82
    %183 = vmatprep.subr.mxu0 0.0
    %184 = vmatpush1.msra.mxu0 %v83
    %185 = vmatprep.subr.mxu0 0.0
    %186 = vmatpush1.msra.mxu0 %v84
    %187 = vmatprep.subr.mxu0 0.0
    %188 = vmatpush1.msra.mxu0 %v85
    %189 = vmatprep.subr.mxu0 0.0
    %190 = vmatpush1.msra.mxu0 %v86
    %191 = vmatprep.subr.mxu0 0.0
    %192 = vmatpush1.msra.mxu0 %v87
    %193 = vmatprep.subr.mxu0 0.0
    %194 = vmatpush1.msra.mxu0 %v88
    %195 = vmatprep.subr.mxu0 0.0
    %196 = vmatpush1.msra.mxu0 %v89
    %197 = vmatprep.subr.mxu0 0.0
    %198 = vmatpush1.msra.mxu0 %v90
    %199 = vmatprep.subr.mxu0 0.0
    %200 = vmatpush1.msra.mxu0 %v91
    %201 = vmatprep.subr.mxu0 0.0
    %202 = vmatpush1.msra.mxu0 0.0
    %203 = vmatprep.subr.mxu0 0.0
    %204 = vmatpush1.msra.mxu0 0.0
    %205 = vmatprep.subr.mxu0 0.0
    %206 = vmatpush1.msra.mxu0 0.0
    %207 = vmatprep.subr.mxu0 0.0
    %208 = vmatpush1.msra.mxu0 0.0
    %209 = vmatprep.subr.mxu0 0.0
    %210 = vmatpush1.msra.mxu0 0.0
    %211 = vmatprep.subr.mxu0 0.0
    %212 = vmatpush1.msra.mxu0 0.0
    %213 = vmatprep.subr.mxu0 0.0
    %214 = vmatpush1.msra.mxu0 0.0
    %215 = vmatprep.subr.mxu0 0.0
    %216 = vmatpush1.msra.mxu0 0.0
    %217 = vmatprep.subr.mxu0 0.0
    %218 = vmatpush1.msra.mxu0 0.0
    %219 = vmatprep.subr.mxu0 0.0
    %220 = vmatpush1.msra.mxu0 0.0
    %221 = vmatprep.subr.mxu0 0.0
    %222 = vmatpush1.msra.mxu0 0.0
    %223 = vmatprep.subr.mxu0 0.0
    %224 = vmatpush1.msra.mxu0 0.0
    %225 = vmatprep.subr.mxu0 0.0
    %226 = vmatpush1.msra.mxu0 0.0
    %227 = vmatprep.subr.mxu0 0.0
    %228 = vmatpush1.msra.mxu0 0.0
    %229 = vmatprep.subr.mxu0 0.0
    %230 = vmatpush1.msra.mxu0 0.0
    %231 = vmatprep.subr.mxu0 0.0
    %232 = vmatpush1.msra.mxu0 0.0
    %233 = vmatprep.mubr.f32.mxu0 0.0
    %234 = vmatmul.mubr.f32.gmra.mrb[0].mxu0 %v161
    %v235 = vpop.f32.mrb[0].mxu0
    %v236 = vadd.f32 0.0, %v235
    %v237 = vpop.f32.mrb[0].mxu0
    %238 = vmatprep.mubr.f32.mxu0 0.0
    %239 = vmatmul.mubr.f32.gmra.mrb[0].mxu0 %v162
    %v240 = vpop.f32.mrb[0].mxu0
    %v241 = vadd.f32 0.0, %v240
    %v242 = vpop.f32.mrb[0].mxu0
    %243 = vmatprep.mubr.f32.mxu0 0.0
    %244 = vmatmul.mubr.f32.gmra.mrb[0].mxu0 %v163
    %v245 = vpop.f32.mrb[0].mxu0
    %v246 = vadd.f32 0.0, %v245
    %v247 = vpop.f32.mrb[0].mxu0
    %248 = vmatprep.mubr.f32.mxu0 0.0
    %249 = vmatmul.mubr.f32.gmra.mrb[0].mxu0 %v164
    %v250 = vpop.f32.mrb[0].mxu0
    %v251 = vadd.f32 0.0, %v250
    %v252 = vpop.f32.mrb[0].mxu0
    %253 = vmatprep.mubr.f32.mxu0 0.0
    %254 = vmatmul.mubr.f32.gmra.mrb[0].mxu0 %v165
    %v255 = vpop.f32.mrb[0].mxu0
    %v256 = vadd.f32 0.0, %v255
    %v257 = vpop.f32.mrb[0].mxu0
    %258 = vmatprep.mubr.f32.mxu0 0.0
    %259 = vmatmul.mubr.f32.gmra.mrb[0].mxu0 %v166
    %v260 = vpop.f32.mrb[0].mxu0
    %v261 = vadd.f32 0.0, %v260
    %v262 = vpop.f32.mrb[0].mxu0
    %263 = vmatprep.mubr.f32.mxu0 0.0
    %264 = vmatmul.mubr.f32.gmra.mrb[0].mxu0 %v167
    %v265 = vpop.f32.mrb[0].mxu0
    %v266 = vadd.f32 0.0, %v265
    %v267 = vpop.f32.mrb[0].mxu0
    %268 = vmatprep.mubr.f32.mxu0 0.0
    %269 = vmatmul.mubr.f32.gmra.mrb[0].mxu0 %v168
    %v270 = vpop.f32.mrb[0].mxu0
    %v271 = vadd.f32 0.0, %v270
    %v272 = vpop.f32.mrb[0].mxu0
    %273 = vdwg.mxu0
    %v274 = vadd.f32 %v236, %v156
    %v275 = vadd.f32 %v241, %v156
    %v276 = vadd.f32 %v246, %v156
    %v277 = vadd.f32 %v251, %v156
    %v278 = vadd.f32 %v256, %v156
    %v279 = vadd.f32 %v261, %v156
    %v280 = vadd.f32 %v266, %v156
    %v281 = vadd.f32 %v271, %v156
    %v282 = vld [vmem:[#allocation5] sm:$0xff]
    %s283 = scalar_lea.vmem [#allocation5], 8
    %v284 = vld [vmem:[%s283] sm:$0xff]
    %285 = vmatprep.subr.mxu0 0.0
    %286 = vmatpush1.msra.mxu0 %v92
    %287 = vmatprep.subr.mxu0 0.0
    %288 = vmatpush1.msra.mxu0 %v93
    %289 = vmatprep.subr.mxu0 0.0
    %290 = vmatpush1.msra.mxu0 %v94
    %291 = vmatprep.subr.mxu0 0.0
    %292 = vmatpush1.msra.mxu0 %v95
    %293 = vmatprep.subr.mxu0 0.0
    %294 = vmatpush1.msra.mxu0 %v96
    %295 = vmatprep.subr.mxu0 0.0
    %296 = vmatpush1.msra.mxu0 %v97
    %297 = vmatprep.subr.mxu0 0.0
    %298 = vmatpush1.msra.mxu0 %v98
    %299 = vmatprep.subr.mxu0 0.0
    %300 = vmatpush1.msra.mxu0 %v99
    %301 = vmatprep.subr.mxu0 0.0
    %302 = vmatpush1.msra.mxu0 %v100
    %303 = vmatprep.subr.mxu0 0.0
    %304 = vmatpush1.msra.mxu0 %v101
    %305 = vmatprep.subr.mxu0 0.0
    %306 = vmatpush1.msra.mxu0 %v102
    %307 = vmatprep.subr.mxu0 0.0
    %308 = vmatpush1.msra.mxu0 %v103
    %309 = vmatprep.subr.mxu0 0.0
    %310 = vmatpush1.msra.mxu0 %v104
    %311 = vmatprep.subr.mxu0 0.0
    %312 = vmatpush1.msra.mxu0 %v105
    %313 = vmatprep.subr.mxu0 0.0
    %314 = vmatpush1.msra.mxu0 %v106
    %315 = vmatprep.subr.mxu0 0.0
    %316 = vmatpush1.msra.mxu0 %v107
    %317 = vmatprep.subr.mxu0 0.0
    %318 = vmatpush1.msra.mxu0 0.0
    %319 = vmatprep.subr.mxu0 0.0
    %320 = vmatpush1.msra.mxu0 0.0
    %321 = vmatprep.subr.mxu0 0.0
    %322 = vmatpush1.msra.mxu0 0.0
    %323 = vmatprep.subr.mxu0 0.0
    %324 = vmatpush1.msra.mxu0 0.0
    %325 = vmatprep.subr.mxu0 0.0
    %326 = vmatpush1.msra.mxu0 0.0
    %327 = vmatprep.subr.mxu0 0.0
    %328 = vmatpush1.msra.mxu0 0.0
    %329 = vmatprep.subr.mxu0 0.0
    %330 = vmatpush1.msra.mxu0 0.0
    %331 = vmatprep.subr.mxu0 0.0
    %332 = vmatpush1.msra.mxu0 0.0
    %333 = vmatprep.subr.mxu0 0.0
    %334 = vmatpush1.msra.mxu0 0.0
    %335 = vmatprep.subr.mxu0 0.0
    %336 = vmatpush1.msra.mxu0 0.0
    %337 = vmatprep.subr.mxu0 0.0
    %338 = vmatpush1.msra.mxu0 0.0
    %339 = vmatprep.subr.mxu0 0.0
    %340 = vmatpush1.msra.mxu0 0.0
    %341 = vmatprep.subr.mxu0 0.0
    %342 = vmatpush1.msra.mxu0 0.0
    %343 = vmatprep.subr.mxu0 0.0
    %344 = vmatpush1.msra.mxu0 0.0
    %345 = vmatprep.subr.mxu0 0.0
    %346 = vmatpush1.msra.mxu0 0.0
    %347 = vmatprep.subr.mxu0 0.0
    %348 = vmatpush1.msra.mxu0 0.0
    %349 = vmatprep.mubr.f32.mxu0 0.0
    %350 = vmatmul.mubr.f32.gmra.mrb[0].mxu0 %v282
    %v351 = vpop.f32.mrb[0].mxu0
    %v352 = vadd.f32 0.0, %v351
    %v353 = vpop.f32.mrb[0].mxu0
    %354 = vdwg.mxu0
    %v355 = vadd.f32 %v274, %v352
    %v356 = vtanh.pop %v355
    %357 = vmatprep.subr.mxu0 0.0
    %358 = vmatpush1.msra.mxu0 %v124
    %359 = vmatprep.subr.mxu0 0.0
    %360 = vmatpush1.msra.mxu0 %v125
    %361 = vmatprep.subr.mxu0 0.0
    %362 = vmatpush1.msra.mxu0 %v126
    %363 = vmatprep.subr.mxu0 0.0
    %364 = vmatpush1.msra.mxu0 %v127
    %365 = vmatprep.subr.mxu0 0.0
    %366 = vmatpush1.msra.mxu0 %v128
    %367 = vmatprep.subr.mxu0 0.0
    %368 = vmatpush1.msra.mxu0 %v129
    %369 = vmatprep.subr.mxu0 0.0
    %370 = vmatpush1.msra.mxu0 %v130
    %371 = vmatprep.subr.mxu0 0.0
    %372 = vmatpush1.msra.mxu0 %v131
    %373 = vmatprep.subr.mxu0 0.0
    %374 = vmatpush1.msra.mxu0 %v132
    %375 = vmatprep.subr.mxu0 0.0
    %376 = vmatpush1.msra.mxu0 %v133
    %377 = vmatprep.subr.mxu0 0.0
    %378 = vmatpush1.msra.mxu0 %v134
    %379 = vmatprep.subr.mxu0 0.0
    %380 = vmatpush1.msra.mxu0 %v135
    %381 = vmatprep.subr.mxu0 0.0
    %382 = vmatpush1.msra.mxu0 %v136
    %383 = vmatprep.subr.mxu0 0.0
    %384 = vmatpush1.msra.mxu0 %v137
    %385 = vmatprep.subr.mxu0 0.0
    %386 = vmatpush1.msra.mxu0 %v138
    %387 = vmatprep.subr.mxu0 0.0
    %388 = vmatpush1.msra.mxu0 %v139
    %389 = vmatprep.subr.mxu0 0.0
    %390 = vmatpush1.msra.mxu0 0.0
    %391 = vmatprep.subr.mxu0 0.0
    %392 = vmatpush1.msra.mxu0 0.0
    %393 = vmatprep.subr.mxu0 0.0
    %394 = vmatpush1.msra.mxu0 0.0
    %395 = vmatprep.subr.mxu0 0.0
    %396 = vmatpush1.msra.mxu0 0.0
    %397 = vmatprep.subr.mxu0 0.0
    %398 = vmatpush1.msra.mxu0 0.0
    %399 = vmatprep.subr.mxu0 0.0
    %400 = vmatpush1.msra.mxu0 0.0
    %401 = vmatprep.subr.mxu0 0.0
    %402 = vmatpush1.msra.mxu0 0.0
    %403 = vmatprep.subr.mxu0 0.0
    %404 = vmatpush1.msra.mxu0 0.0
    %405 = vmatprep.subr.mxu0 0.0
    %406 = vmatpush1.msra.mxu0 0.0
    %407 = vmatprep.subr.mxu0 0.0
    %408 = vmatpush1.msra.mxu0 0.0
    %409 = vmatprep.subr.mxu0 0.0
    %410 = vmatpush1.msra.mxu0 0.0
    %411 = vmatprep.subr.mxu0 0.0
    %412 = vmatpush1.msra.mxu0 0.0
    %413 = vmatprep.subr.mxu0 0.0
    %414 = vmatpush1.msra.mxu0 0.0
    %415 = vmatprep.subr.mxu0 0.0
    %416 = vmatpush1.msra.mxu0 0.0
    %417 = vmatprep.subr.mxu0 0.0
    %418 = vmatpush1.msra.mxu0 0.0
    %419 = vmatprep.subr.mxu0 0.0
    %420 = vmatpush1.msra.mxu0 0.0
    %421 = vmatprep.mubr.f32.mxu0 0.0
    %422 = vmatmul.mubr.f32.gmra.mrb[0].mxu0 %v284
    %v423 = vpop.f32.mrb[0].mxu0
    %v424 = vadd.f32 0.0, %v423
    %v425 = vpop.f32.mrb[0].mxu0
    %426 = vdwg.mxu0
    %427 = vmatprep.subr.mxu0 0.0
    %428 = vmatpush1.msra.mxu0 %v108
    %429 = vmatprep.subr.mxu0 0.0
    %430 = vmatpush1.msra.mxu0 %v109
    %431 = vmatprep.subr.mxu0 0.0
    %432 = vmatpush1.msra.mxu0 %v110
    %433 = vmatprep.subr.mxu0 0.0
    %434 = vmatpush1.msra.mxu0 %v111
    %435 = vmatprep.subr.mxu0 0.0
    %436 = vmatpush1.msra.mxu0 %v112
    %437 = vmatprep.subr.mxu0 0.0
    %438 = vmatpush1.msra.mxu0 %v113
    %439 = vmatprep.subr.mxu0 0.0
    %440 = vmatpush1.msra.mxu0 %v114
    %441 = vmatprep.subr.mxu0 0.0
    %442 = vmatpush1.msra.mxu0 %v115
    %443 = vmatprep.subr.mxu0 0.0
    %444 = vmatpush1.msra.mxu0 %v116
    %445 = vmatprep.subr.mxu0 0.0
    %446 = vmatpush1.msra.mxu0 %v117
    %447 = vmatprep.subr.mxu0 0.0
    %448 = vmatpush1.msra.mxu0 %v118
    %449 = vmatprep.subr.mxu0 0.0
    %450 = vmatpush1.msra.mxu0 %v119
    %451 = vmatprep.subr.mxu0 0.0
    %452 = vmatpush1.msra.mxu0 %v120
    %453 = vmatprep.subr.mxu0 0.0
    %454 = vmatpush1.msra.mxu0 %v121
    %455 = vmatprep.subr.mxu0 0.0
    %456 = vmatpush1.msra.mxu0 %v122
    %457 = vmatprep.subr.mxu0 0.0
    %458 = vmatpush1.msra.mxu0 %v123
    %459 = vmatprep.subr.mxu0 0.0
    %460 = vmatpush1.msra.mxu0 0.0
    %461 = vmatprep.subr.mxu0 0.0
    %462 = vmatpush1.msra.mxu0 0.0
    %463 = vmatprep.subr.mxu0 0.0
    %464 = vmatpush1.msra.mxu0 0.0
    %465 = vmatprep.subr.mxu0 0.0
    %466 = vmatpush1.msra.mxu0 0.0
    %467 = vmatprep.subr.mxu0 0.0
    %468 = vmatpush1.msra.mxu0 0.0
    %469 = vmatprep.subr.mxu0 0.0
    %470 = vmatpush1.msra.mxu0 0.0
    %471 = vmatprep.subr.mxu0 0.0
    %472 = vmatpush1.msra.mxu0 0.0
    %473 = vmatprep.subr.mxu0 0.0
    %474 = vmatpush1.msra.mxu0 0.0
    %475 = vmatprep.subr.mxu0 0.0
    %476 = vmatpush1.msra.mxu0 0.0
    %477 = vmatprep.subr.mxu0 0.0
    %478 = vmatpush1.msra.mxu0 0.0
    %479 = vmatprep.subr.mxu0 0.0
    %480 = vmatpush1.msra.mxu0 0.0
    %481 = vmatprep.subr.mxu0 0.0
    %482 = vmatpush1.msra.mxu0 0.0
    %483 = vmatprep.subr.mxu0 0.0
    %484 = vmatpush1.msra.mxu0 0.0
    %485 = vmatprep.subr.mxu0 0.0
    %486 = vmatpush1.msra.mxu0 0.0
    %487 = vmatprep.subr.mxu0 0.0
    %488 = vmatpush1.msra.mxu0 0.0
    %489 = vmatprep.subr.mxu0 0.0
    %490 = vmatpush1.msra.mxu0 0.0
    %491 = vmatprep.mubr.f32.mxu0 0.0
    %492 = vmatmul.mubr.f32.gmra.mrb[0].mxu0 %v356
    %v493 = vpop.f32.mrb[0].mxu0
    %v494 = vadd.f32 %v424, %v493
    %v495 = vpop.f32.mrb[0].mxu0
    %496 = vdwg.mxu0
    %v497 = vadd.f32 %v494, %v158
    %v498 = vtanh.pop %v497
    %499 = vmatprep.subr.mxu0 0.0
    %500 = vmatpush1.msra.mxu0 %v92
    %501 = vmatprep.subr.mxu0 0.0
    %502 = vmatpush1.msra.mxu0 %v93
    %503 = vmatprep.subr.mxu0 0.0
    %504 = vmatpush1.msra.mxu0 %v94
    %505 = vmatprep.subr.mxu0 0.0
    %506 = vmatpush1.msra.mxu0 %v95
    %507 = vmatprep.subr.mxu0 0.0
    %508 = vmatpush1.msra.mxu0 %v96
    %509 = vmatprep.subr.mxu0 0.0
    %510 = vmatpush1.msra.mxu0 %v97
    %511 = vmatprep.subr.mxu0 0.0
    %512 = vmatpush1.msra.mxu0 %v98
    %513 = vmatprep.subr.mxu0 0.0
    %514 = vmatpush1.msra.mxu0 %v99
    %515 = vmatprep.subr.mxu0 0.0
    %516 = vmatpush1.msra.mxu0 %v100
    %517 = vmatprep.subr.mxu0 0.0
    %518 = vmatpush1.msra.mxu0 %v101
    %519 = vmatprep.subr.mxu0 0.0
    %520 = vmatpush1.msra.mxu0 %v102
    %521 = vmatprep.subr.mxu0 0.0
    %522 = vmatpush1.msra.mxu0 %v103
    %523 = vmatprep.subr.mxu0 0.0
    %524 = vmatpush1.msra.mxu0 %v104
    %525 = vmatprep.subr.mxu0 0.0
    %526 = vmatpush1.msra.mxu0 %v105
    %527 = vmatprep.subr.mxu0 0.0
    %528 = vmatpush1.msra.mxu0 %v106
    %529 = vmatprep.subr.mxu0 0.0
    %530 = vmatpush1.msra.mxu0 %v107
    %531 = vmatprep.subr.mxu0 0.0
    %532 = vmatpush1.msra.mxu0 0.0
    %533 = vmatprep.subr.mxu0 0.0
    %534 = vmatpush1.msra.mxu0 0.0
    %535 = vmatprep.subr.mxu0 0.0
    %536 = vmatpush1.msra.mxu0 0.0
    %537 = vmatprep.subr.mxu0 0.0
    %538 = vmatpush1.msra.mxu0 0.0
    %539 = vmatprep.subr.mxu0 0.0
    %540 = vmatpush1.msra.mxu0 0.0
    %541 = vmatprep.subr.mxu0 0.0
    %542 = vmatpush1.msra.mxu0 0.0
    %543 = vmatprep.subr.mxu0 0.0
    %544 = vmatpush1.msra.mxu0 0.0
    %545 = vmatprep.subr.mxu0 0.0
    %546 = vmatpush1.msra.mxu0 0.0
    %547 = vmatprep.subr.mxu0 0.0
    %548 = vmatpush1.msra.mxu0 0.0
    %549 = vmatprep.subr.mxu0 0.0
    %550 = vmatpush1.msra.mxu0 0.0
    %551 = vmatprep.subr.mxu0 0.0
    %552 = vmatpush1.msra.mxu0 0.0
    %553 = vmatprep.subr.mxu0 0.0
    %554 = vmatpush1.msra.mxu0 0.0
    %555 = vmatprep.subr.mxu0 0.0
    %556 = vmatpush1.msra.mxu0 0.0
    %557 = vmatprep.subr.mxu0 0.0
    %558 = vmatpush1.msra.mxu0 0.0
    %559 = vmatprep.subr.mxu0 0.0
    %560 = vmatpush1.msra.mxu0 0.0
    %561 = vmatprep.subr.mxu0 0.0
    %562 = vmatpush1.msra.mxu0 0.0
    %563 = vmatprep.mubr.f32.mxu0 0.0
    %564 = vmatmul.mubr.f32.gmra.mrb[0].mxu0 %v356
    %v565 = vpop.f32.mrb[0].mxu0
    %v566 = vadd.f32 0.0, %v565
    %v567 = vpop.f32.mrb[0].mxu0
    %568 = vdwg.mxu0
    %v569 = vadd.f32 %v275, %v566
    %v570 = vtanh.pop %v569
    %571 = vmatprep.subr.mxu0 0.0
    %572 = vmatpush1.msra.mxu0 %v124
    %573 = vmatprep.subr.mxu0 0.0
    %574 = vmatpush1.msra.mxu0 %v125
    %575 = vmatprep.subr.mxu0 0.0
    %576 = vmatpush1.msra.mxu0 %v126
    %577 = vmatprep.subr.mxu0 0.0
    %578 = vmatpush1.msra.mxu0 %v127
    %579 = vmatprep.subr.mxu0 0.0
    %580 = vmatpush1.msra.mxu0 %v128
    %581 = vmatprep.subr.mxu0 0.0
    %582 = vmatpush1.msra.mxu0 %v129
    %583 = vmatprep.subr.mxu0 0.0
    %584 = vmatpush1.msra.mxu0 %v130
    %585 = vmatprep.subr.mxu0 0.0
    %586 = vmatpush1.msra.mxu0 %v131
    %587 = vmatprep.subr.mxu0 0.0
    %588 = vmatpush1.msra.mxu0 %v132
    %589 = vmatprep.subr.mxu0 0.0
    %590 = vmatpush1.msra.mxu0 %v133
    %591 = vmatprep.subr.mxu0 0.0
    %592 = vmatpush1.msra.mxu0 %v134
    %593 = vmatprep.subr.mxu0 0.0
    %594 = vmatpush1.msra.mxu0 %v135
    %595 = vmatprep.subr.mxu0 0.0
    %596 = vmatpush1.msra.mxu0 %v136
    %597 = vmatprep.subr.mxu0 0.0
    %598 = vmatpush1.msra.mxu0 %v137
    %599 = vmatprep.subr.mxu0 0.0
    %600 = vmatpush1.msra.mxu0 %v138
    %601 = vmatprep.subr.mxu0 0.0
    %602 = vmatpush1.msra.mxu0 %v139
    %603 = vmatprep.subr.mxu0 0.0
    %604 = vmatpush1.msra.mxu0 0.0
    %605 = vmatprep.subr.mxu0 0.0
    %606 = vmatpush1.msra.mxu0 0.0
    %607 = vmatprep.subr.mxu0 0.0
    %608 = vmatpush1.msra.mxu0 0.0
    %609 = vmatprep.subr.mxu0 0.0
    %610 = vmatpush1.msra.mxu0 0.0
    %611 = vmatprep.subr.mxu0 0.0
    %612 = vmatpush1.msra.mxu0 0.0
    %613 = vmatprep.subr.mxu0 0.0
    %614 = vmatpush1.msra.mxu0 0.0
    %615 = vmatprep.subr.mxu0 0.0
    %616 = vmatpush1.msra.mxu0 0.0
    %617 = vmatprep.subr.mxu0 0.0
    %618 = vmatpush1.msra.mxu0 0.0
    %619 = vmatprep.subr.mxu0 0.0
    %620 = vmatpush1.msra.mxu0 0.0
    %621 = vmatprep.subr.mxu0 0.0
    %622 = vmatpush1.msra.mxu0 0.0
    %623 = vmatprep.subr.mxu0 0.0
    %624 = vmatpush1.msra.mxu0 0.0
    %625 = vmatprep.subr.mxu0 0.0
    %626 = vmatpush1.msra.mxu0 0.0
    %627 = vmatprep.subr.mxu0 0.0
    %628 = vmatpush1.msra.mxu0 0.0
    %629 = vmatprep.subr.mxu0 0.0
    %630 = vmatpush1.msra.mxu0 0.0
    %631 = vmatprep.subr.mxu0 0.0
    %632 = vmatpush1.msra.mxu0 0.0
    %633 = vmatprep.subr.mxu0 0.0
    %634 = vmatpush1.msra.mxu0 0.0
    %635 = vmatprep.mubr.f32.mxu0 0.0
    %636 = vmatmul.mubr.f32.gmra.mrb[0].mxu0 %v498
    %v637 = vpop.f32.mrb[0].mxu0
    %v638 = vadd.f32 0.0, %v637
    %v639 = vpop.f32.mrb[0].mxu0
    %640 = vdwg.mxu0
    %641 = vmatprep.subr.mxu0 0.0
    %642 = vmatpush1.msra.mxu0 %v108
    %643 = vmatprep.subr.mxu0 0.0
    %644 = vmatpush1.msra.mxu0 %v109
    %645 = vmatprep.subr.mxu0 0.0
    %646 = vmatpush1.msra.mxu0 %v110
    %647 = vmatprep.subr.mxu0 0.0
    %648 = vmatpush1.msra.mxu0 %v111
    %649 = vmatprep.subr.mxu0 0.0
    %650 = vmatpush1.msra.mxu0 %v112
    %651 = vmatprep.subr.mxu0 0.0
    %652 = vmatpush1.msra.mxu0 %v113
    %653 = vmatprep.subr.mxu0 0.0
    %654 = vmatpush1.msra.mxu0 %v114
    %655 = vmatprep.subr.mxu0 0.0
    %656 = vmatpush1.msra.mxu0 %v115
    %657 = vmatprep.subr.mxu0 0.0
    %658 = vmatpush1.msra.mxu0 %v116
    %659 = vmatprep.subr.mxu0 0.0
    %660 = vmatpush1.msra.mxu0 %v117
    %661 = vmatprep.subr.mxu0 0.0
    %662 = vmatpush1.msra.mxu0 %v118
    %663 = vmatprep.subr.mxu0 0.0
    %664 = vmatpush1.msra.mxu0 %v119
    %665 = vmatprep.subr.mxu0 0.0
    %666 = vmatpush1.msra.mxu0 %v120
    %667 = vmatprep.subr.mxu0 0.0
    %668 = vmatpush1.msra.mxu0 %v121
    %669 = vmatprep.subr.mxu0 0.0
    %670 = vmatpush1.msra.mxu0 %v122
    %671 = vmatprep.subr.mxu0 0.0
    %672 = vmatpush1.msra.mxu0 %v123
    %673 = vmatprep.subr.mxu0 0.0
    %674 = vmatpush1.msra.mxu0 0.0
    %675 = vmatprep.subr.mxu0 0.0
    %676 = vmatpush1.msra.mxu0 0.0
    %677 = vmatprep.subr.mxu0 0.0
    %678 = vmatpush1.msra.mxu0 0.0
    %679 = vmatprep.subr.mxu0 0.0
    %680 = vmatpush1.msra.mxu0 0.0
    %681 = vmatprep.subr.mxu0 0.0
    %682 = vmatpush1.msra.mxu0 0.0
    %683 = vmatprep.subr.mxu0 0.0
    %684 = vmatpush1.msra.mxu0 0.0
    %685 = vmatprep.subr.mxu0 0.0
    %686 = vmatpush1.msra.mxu0 0.0
    %687 = vmatprep.subr.mxu0 0.0
    %688 = vmatpush1.msra.mxu0 0.0
    %689 = vmatprep.subr.mxu0 0.0
    %690 = vmatpush1.msra.mxu0 0.0
    %691 = vmatprep.subr.mxu0 0.0
    %692 = vmatpush1.msra.mxu0 0.0
    %693 = vmatprep.subr.mxu0 0.0
    %694 = vmatpush1.msra.mxu0 0.0
    %695 = vmatprep.subr.mxu0 0.0
    %696 = vmatpush1.msra.mxu0 0.0
    %697 = vmatprep.subr.mxu0 0.0
    %698 = vmatpush1.msra.mxu0 0.0
    %699 = vmatprep.subr.mxu0 0.0
    %700 = vmatpush1.msra.mxu0 0.0
    %701 = vmatprep.subr.mxu0 0.0
    %702 = vmatpush1.msra.mxu0 0.0
    %703 = vmatprep.subr.mxu0 0.0
    %704 = vmatpush1.msra.mxu0 0.0
    %705 = vmatprep.mubr.f32.mxu0 0.0
    %706 = vmatmul.mubr.f32.gmra.mrb[0].mxu0 %v570
    %v707 = vpop.f32.mrb[0].mxu0
    %v708 = vadd.f32 %v638, %v707
    %v709 = vpop.f32.mrb[0].mxu0
    %710 = vdwg.mxu0
    %v711 = vadd.f32 %v708, %v158
    %v712 = vtanh.pop %v711
    %713 = vmatprep.subr.mxu0 0.0
    %714 = vmatpush1.msra.mxu0 %v92
    %715 = vmatprep.subr.mxu0 0.0
    %716 = vmatpush1.msra.mxu0 %v93
    %717 = vmatprep.subr.mxu0 0.0
    %718 = vmatpush1.msra.mxu0 %v94
    %719 = vmatprep.subr.mxu0 0.0
    %720 = vmatpush1.msra.mxu0 %v95
    %721 = vmatprep.subr.mxu0 0.0
    %722 = vmatpush1.msra.mxu0 %v96
    %723 = vmatprep.subr.mxu0 0.0
    %724 = vmatpush1.msra.mxu0 %v97
    %725 = vmatprep.subr.mxu0 0.0
    %726 = vmatpush1.msra.mxu0 %v98
    %727 = vmatprep.subr.mxu0 0.0
    %728 = vmatpush1.msra.mxu0 %v99
    %729 = vmatprep.subr.mxu0 0.0
    %730 = vmatpush1.msra.mxu0 %v100
    %731 = vmatprep.subr.mxu0 0.0
    %732 = vmatpush1.msra.mxu0 %v101
    %733 = vmatprep.subr.mxu0 0.0
    %734 = vmatpush1.msra.mxu0 %v102
    %735 = vmatprep.subr.mxu0 0.0
    %736 = vmatpush1.msra.mxu0 %v103
    %737 = vmatprep.subr.mxu0 0.0
    %738 = vmatpush1.msra.mxu0 %v104
    %739 = vmatprep.subr.mxu0 0.0
    %740 = vmatpush1.msra.mxu0 %v105
    %741 = vmatprep.subr.mxu0 0.0
    %742 = vmatpush1.msra.mxu0 %v106
    %743 = vmatprep.subr.mxu0 0.0
    %744 = vmatpush1.msra.mxu0 %v107
    %745 = vmatprep.subr.mxu0 0.0
    %746 = vmatpush1.msra.mxu0 0.0
    %747 = vmatprep.subr.mxu0 0.0
    %748 = vmatpush1.msra.mxu0 0.0
    %749 = vmatprep.subr.mxu0 0.0
    %750 = vmatpush1.msra.mxu0 0.0
    %751 = vmatprep.subr.mxu0 0.0
    %752 = vmatpush1.msra.mxu0 0.0
    %753 = vmatprep.subr.mxu0 0.0
    %754 = vmatpush1.msra.mxu0 0.0
    %755 = vmatprep.subr.mxu0 0.0
    %756 = vmatpush1.msra.mxu0 0.0
    %757 = vmatprep.subr.mxu0 0.0
    %758 = vmatpush1.msra.mxu0 0.0
    %759 = vmatprep.subr.mxu0 0.0
    %760 = vmatpush1.msra.mxu0 0.0
    %761 = vmatprep.subr.mxu0 0.0
    %762 = vmatpush1.msra.mxu0 0.0
    %763 = vmatprep.subr.mxu0 0.0
    %764 = vmatpush1.msra.mxu0 0.0
    %765 = vmatprep.subr.mxu0 0.0
    %766 = vmatpush1.msra.mxu0 0.0
    %767 = vmatprep.subr.mxu0 0.0
    %768 = vmatpush1.msra.mxu0 0.0
    %769 = vmatprep.subr.mxu0 0.0
    %770 = vmatpush1.msra.mxu0 0.0
    %771 = vmatprep.subr.mxu0 0.0
    %772 = vmatpush1.msra.mxu0 0.0
    %773 = vmatprep.subr.mxu0 0.0
    %774 = vmatpush1.msra.mxu0 0.0
    %775 = vmatprep.subr.mxu0 0.0
    %776 = vmatpush1.msra.mxu0 0.0
    %777 = vmatprep.mubr.f32.mxu0 0.0
    %778 = vmatmul.mubr.f32.gmra.mrb[0].mxu0 %v570
    %v779 = vpop.f32.mrb[0].mxu0
    %v780 = vadd.f32 0.0, %v779
    %v781 = vpop.f32.mrb[0].mxu0
    %782 = vdwg.mxu0
    %v783 = vadd.f32 %v276, %v780
    %v784 = vtanh.pop %v783
    %785 = vmatprep.subr.mxu0 0.0
    %786 = vmatpush1.msra.mxu0 %v124
    %787 = vmatprep.subr.mxu0 0.0
    %788 = vmatpush1.msra.mxu0 %v125
    %789 = vmatprep.subr.mxu0 0.0
    %790 = vmatpush1.msra.mxu0 %v126
    %791 = vmatprep.subr.mxu0 0.0
    %792 = vmatpush1.msra.mxu0 %v127
    %793 = vmatprep.subr.mxu0 0.0
    %794 = vmatpush1.msra.mxu0 %v128
    %795 = vmatprep.subr.mxu0 0.0
    %796 = vmatpush1.msra.mxu0 %v129
    %797 = vmatprep.subr.mxu0 0.0
    %798 = vmatpush1.msra.mxu0 %v130
    %799 = vmatprep.subr.mxu0 0.0
    %800 = vmatpush1.msra.mxu0 %v131
    %801 = vmatprep.subr.mxu0 0.0
    %802 = vmatpush1.msra.mxu0 %v132
    %803 = vmatprep.subr.mxu0 0.0
    %804 = vmatpush1.msra.mxu0 %v133
    %805 = vmatprep.subr.mxu0 0.0
    %806 = vmatpush1.msra.mxu0 %v134
    %807 = vmatprep.subr.mxu0 0.0
    %808 = vmatpush1.msra.mxu0 %v135
    %809 = vmatprep.subr.mxu0 0.0
    %810 = vmatpush1.msra.mxu0 %v136
    %811 = vmatprep.subr.mxu0 0.0
    %812 = vmatpush1.msra.mxu0 %v137
    %813 = vmatprep.subr.mxu0 0.0
    %814 = vmatpush1.msra.mxu0 %v138
    %815 = vmatprep.subr.mxu0 0.0
    %816 = vmatpush1.msra.mxu0 %v139
    %817 = vmatprep.subr.mxu0 0.0
    %818 = vmatpush1.msra.mxu0 0.0
    %819 = vmatprep.subr.mxu0 0.0
    %820 = vmatpush1.msra.mxu0 0.0
    %821 = vmatprep.subr.mxu0 0.0
    %822 = vmatpush1.msra.mxu0 0.0
    %823 = vmatprep.subr.mxu0 0.0
    %824 = vmatpush1.msra.mxu0 0.0
    %825 = vmatprep.subr.mxu0 0.0
    %826 = vmatpush1.msra.mxu0 0.0
    %827 = vmatprep.subr.mxu0 0.0
    %828 = vmatpush1.msra.mxu0 0.0
    %829 = vmatprep.subr.mxu0 0.0
    %830 = vmatpush1.msra.mxu0 0.0
    %831 = vmatprep.subr.mxu0 0.0
    %832 = vmatpush1.msra.mxu0 0.0
    %833 = vmatprep.subr.mxu0 0.0
    %834 = vmatpush1.msra.mxu0 0.0
    %835 = vmatprep.subr.mxu0 0.0
    %836 = vmatpush1.msra.mxu0 0.0
    %837 = vmatprep.subr.mxu0 0.0
    %838 = vmatpush1.msra.mxu0 0.0
    %839 = vmatprep.subr.mxu0 0.0
    %840 = vmatpush1.msra.mxu0 0.0
    %841 = vmatprep.subr.mxu0 0.0
    %842 = vmatpush1.msra.mxu0 0.0
    %843 = vmatprep.subr.mxu0 0.0
    %844 = vmatpush1.msra.mxu0 0.0
    %845 = vmatprep.subr.mxu0 0.0
    %846 = vmatpush1.msra.mxu0 0.0
    %847 = vmatprep.subr.mxu0 0.0
    %848 = vmatpush1.msra.mxu0 0.0
    %849 = vmatprep.mubr.f32.mxu0 0.0
    %850 = vmatmul.mubr.f32.gmra.mrb[0].mxu0 %v712
    %v851 = vpop.f32.mrb[0].mxu0
    %v852 = vadd.f32 0.0, %v851
    %v853 = vpop.f32.mrb[0].mxu0
    %854 = vdwg.mxu0
    %855 = vmatprep.subr.mxu0 0.0
    %856 = vmatpush1.msra.mxu0 %v108
    %857 = vmatprep.subr.mxu0 0.0
    %858 = vmatpush1.msra.mxu0 %v109
    %859 = vmatprep.subr.mxu0 0.0
    %860 = vmatpush1.msra.mxu0 %v110
    %861 = vmatprep.subr.mxu0 0.0
    %862 = vmatpush1.msra.mxu0 %v111
    %863 = vmatprep.subr.mxu0 0.0
    %864 = vmatpush1.msra.mxu0 %v112
    %865 = vmatprep.subr.mxu0 0.0
    %866 = vmatpush1.msra.mxu0 %v113
    %867 = vmatprep.subr.mxu0 0.0
    %868 = vmatpush1.msra.mxu0 %v114
    %869 = vmatprep.subr.mxu0 0.0
    %870 = vmatpush1.msra.mxu0 %v115
    %871 = vmatprep.subr.mxu0 0.0
    %872 = vmatpush1.msra.mxu0 %v116
    %873 = vmatprep.subr.mxu0 0.0
    %874 = vmatpush1.msra.mxu0 %v117
    %875 = vmatprep.subr.mxu0 0.0
    %876 = vmatpush1.msra.mxu0 %v118
    %877 = vmatprep.subr.mxu0 0.0
    %878 = vmatpush1.msra.mxu0 %v119
    %879 = vmatprep.subr.mxu0 0.0
    %880 = vmatpush1.msra.mxu0 %v120
    %881 = vmatprep.subr.mxu0 0.0
    %882 = vmatpush1.msra.mxu0 %v121
    %883 = vmatprep.subr.mxu0 0.0
    %884 = vmatpush1.msra.mxu0 %v122
    %885 = vmatprep.subr.mxu0 0.0
    %886 = vmatpush1.msra.mxu0 %v123
    %887 = vmatprep.subr.mxu0 0.0
    %888 = vmatpush1.msra.mxu0 0.0
    %889 = vmatprep.subr.mxu0 0.0
    %890 = vmatpush1.msra.mxu0 0.0
    %891 = vmatprep.subr.mxu0 0.0
    %892 = vmatpush1.msra.mxu0 0.0
    %893 = vmatprep.subr.mxu0 0.0
    %894 = vmatpush1.msra.mxu0 0.0
    %895 = vmatprep.subr.mxu0 0.0
    %896 = vmatpush1.msra.mxu0 0.0
    %897 = vmatprep.subr.mxu0 0.0
    %898 = vmatpush1.msra.mxu0 0.0
    %899 = vmatprep.subr.mxu0 0.0
    %900 = vmatpush1.msra.mxu0 0.0
    %901 = vmatprep.subr.mxu0 0.0
    %902 = vmatpush1.msra.mxu0 0.0
    %903 = vmatprep.subr.mxu0 0.0
    %904 = vmatpush1.msra.mxu0 0.0
    %905 = vmatprep.subr.mxu0 0.0
    %906 = vmatpush1.msra.mxu0 0.0
    %907 = vmatprep.subr.mxu0 0.0
    %908 = vmatpush1.msra.mxu0 0.0
    %909 = vmatprep.subr.mxu0 0.0
    %910 = vmatpush1.msra.mxu0 0.0
    %911 = vmatprep.subr.mxu0 0.0
    %912 = vmatpush1.msra.mxu0 0.0
    %913 = vmatprep.subr.mxu0 0.0
    %914 = vmatpush1.msra.mxu0 0.0
    %915 = vmatprep.subr.mxu0 0.0
    %916 = vmatpush1.msra.mxu0 0.0
    %917 = vmatprep.subr.mxu0 0.0
    %918 = vmatpush1.msra.mxu0 0.0
    %919 = vmatprep.mubr.f32.mxu0 0.0
    %920 = vmatmul.mubr.f32.gmra.mrb[0].mxu0 %v784
    %v921 = vpop.f32.mrb[0].mxu0
    %v922 = vadd.f32 %v852, %v921
    %v923 = vpop.f32.mrb[0].mxu0
    %924 = vdwg.mxu0
    %v925 = vadd.f32 %v922, %v158
    %v926 = vtanh.pop %v925
    %927 = vmatprep.subr.mxu0 0.0
    %928 = vmatpush1.msra.mxu0 %v92
    %929 = vmatprep.subr.mxu0 0.0
    %930 = vmatpush1.msra.mxu0 %v93
    %931 = vmatprep.subr.mxu0 0.0
    %932 = vmatpush1.msra.mxu0 %v94
    %933 = vmatprep.subr.mxu0 0.0
    %934 = vmatpush1.msra.mxu0 %v95
    %935 = vmatprep.subr.mxu0 0.0
    %936 = vmatpush1.msra.mxu0 %v96
    %937 = vmatprep.subr.mxu0 0.0
    %938 = vmatpush1.msra.mxu0 %v97
    %939 = vmatprep.subr.mxu0 0.0
    %940 = vmatpush1.msra.mxu0 %v98
    %941 = vmatprep.subr.mxu0 0.0
    %942 = vmatpush1.msra.mxu0 %v99
    %943 = vmatprep.subr.mxu0 0.0
    %944 = vmatpush1.msra.mxu0 %v100
    %945 = vmatprep.subr.mxu0 0.0
    %946 = vmatpush1.msra.mxu0 %v101
    %947 = vmatprep.subr.mxu0 0.0
    %948 = vmatpush1.msra.mxu0 %v102
    %949 = vmatprep.subr.mxu0 0.0
    %950 = vmatpush1.msra.mxu0 %v103
    %951 = vmatprep.subr.mxu0 0.0
    %952 = vmatpush1.msra.mxu0 %v104
    %953 = vmatprep.subr.mxu0 0.0
    %954 = vmatpush1.msra.mxu0 %v105
    %955 = vmatprep.subr.mxu0 0.0
    %956 = vmatpush1.msra.mxu0 %v106
    %957 = vmatprep.subr.mxu0 0.0
    %958 = vmatpush1.msra.mxu0 %v107
    %959 = vmatprep.subr.mxu0 0.0
    %960 = vmatpush1.msra.mxu0 0.0
    %961 = vmatprep.subr.mxu0 0.0
    %962 = vmatpush1.msra.mxu0 0.0
    %963 = vmatprep.subr.mxu0 0.0
    %964 = vmatpush1.msra.mxu0 0.0
    %965 = vmatprep.subr.mxu0 0.0
    %966 = vmatpush1.msra.mxu0 0.0
    %967 = vmatprep.subr.mxu0 0.0
    %968 = vmatpush1.msra.mxu0 0.0
    %969 = vmatprep.subr.mxu0 0.0
    %970 = vmatpush1.msra.mxu0 0.0
    %971 = vmatprep.subr.mxu0 0.0
    %972 = vmatpush1.msra.mxu0 0.0
    %973 = vmatprep.subr.mxu0 0.0
    %974 = vmatpush1.msra.mxu0 0.0
    %975 = vmatprep.subr.mxu0 0.0
    %976 = vmatpush1.msra.mxu0 0.0
    %977 = vmatprep.subr.mxu0 0.0
    %978 = vmatpush1.msra.mxu0 0.0
    %979 = vmatprep.subr.mxu0 0.0
    %980 = vmatpush1.msra.mxu0 0.0
    %981 = vmatprep.subr.mxu0 0.0
    %982 = vmatpush1.msra.mxu0 0.0
    %983 = vmatprep.subr.mxu0 0.0
    %984 = vmatpush1.msra.mxu0 0.0
    %985 = vmatprep.subr.mxu0 0.0
    %986 = vmatpush1.msra.mxu0 0.0
    %987 = vmatprep.subr.mxu0 0.0
    %988 = vmatpush1.msra.mxu0 0.0
    %989 = vmatprep.subr.mxu0 0.0
    %990 = vmatpush1.msra.mxu0 0.0
    %991 = vmatprep.mubr.f32.mxu0 0.0
    %992 = vmatmul.mubr.f32.gmra.mrb[0].mxu0 %v784
    %v993 = vpop.f32.mrb[0].mxu0
    %v994 = vadd.f32 0.0, %v993
    %v995 = vpop.f32.mrb[0].mxu0
    %996 = vdwg.mxu0
    %v997 = vadd.f32 %v277, %v994
    %v998 = vtanh.pop %v997
    %999 = vmatprep.subr.mxu0 0.0
    %1000 = vmatpush1.msra.mxu0 %v124
    %1001 = vmatprep.subr.mxu0 0.0
    %1002 = vmatpush1.msra.mxu0 %v125
    %1003 = vmatprep.subr.mxu0 0.0
    %1004 = vmatpush1.msra.mxu0 %v126
    %1005 = vmatprep.subr.mxu0 0.0
    %1006 = vmatpush1.msra.mxu0 %v127
    %1007 = vmatprep.subr.mxu0 0.0
    %1008 = vmatpush1.msra.mxu0 %v128
    %1009 = vmatprep.subr.mxu0 0.0
    %1010 = vmatpush1.msra.mxu0 %v129
    %1011 = vmatprep.subr.mxu0 0.0
    %1012 = vmatpush1.msra.mxu0 %v130
    %1013 = vmatprep.subr.mxu0 0.0
    %1014 = vmatpush1.msra.mxu0 %v131
    %1015 = vmatprep.subr.mxu0 0.0
    %1016 = vmatpush1.msra.mxu0 %v132
    %1017 = vmatprep.subr.mxu0 0.0
    %1018 = vmatpush1.msra.mxu0 %v133
    %1019 = vmatprep.subr.mxu0 0.0
    %1020 = vmatpush1.msra.mxu0 %v134
    %1021 = vmatprep.subr.mxu0 0.0
    %1022 = vmatpush1.msra.mxu0 %v135
    %1023 = vmatprep.subr.mxu0 0.0
    %1024 = vmatpush1.msra.mxu0 %v136
    %1025 = vmatprep.subr.mxu0 0.0
    %1026 = vmatpush1.msra.mxu0 %v137
    %1027 = vmatprep.subr.mxu0 0.0
    %1028 = vmatpush1.msra.mxu0 %v138
    %1029 = vmatprep.subr.mxu0 0.0
    %1030 = vmatpush1.msra.mxu0 %v139
    %1031 = vmatprep.subr.mxu0 0.0
    %1032 = vmatpush1.msra.mxu0 0.0
    %1033 = vmatprep.subr.mxu0 0.0
    %1034 = vmatpush1.msra.mxu0 0.0
    %1035 = vmatprep.subr.mxu0 0.0
    %1036 = vmatpush1.msra.mxu0 0.0
    %1037 = vmatprep.subr.mxu0 0.0
    %1038 = vmatpush1.msra.mxu0 0.0
    %1039 = vmatprep.subr.mxu0 0.0
    %1040 = vmatpush1.msra.mxu0 0.0
    %1041 = vmatprep.subr.mxu0 0.0
    %1042 = vmatpush1.msra.mxu0 0.0
    %1043 = vmatprep.subr.mxu0 0.0
    %1044 = vmatpush1.msra.mxu0 0.0
    %1045 = vmatprep.subr.mxu0 0.0
    %1046 = vmatpush1.msra.mxu0 0.0
    %1047 = vmatprep.subr.mxu0 0.0
    %1048 = vmatpush1.msra.mxu0 0.0
    %1049 = vmatprep.subr.mxu0 0.0
    %1050 = vmatpush1.msra.mxu0 0.0
    %1051 = vmatprep.subr.mxu0 0.0
    %1052 = vmatpush1.msra.mxu0 0.0
    %1053 = vmatprep.subr.mxu0 0.0
    %1054 = vmatpush1.msra.mxu0 0.0
    %1055 = vmatprep.subr.mxu0 0.0
    %1056 = vmatpush1.msra.mxu0 0.0
    %1057 = vmatprep.subr.mxu0 0.0
    %1058 = vmatpush1.msra.mxu0 0.0
    %1059 = vmatprep.subr.mxu0 0.0
    %1060 = vmatpush1.msra.mxu0 0.0
    %1061 = vmatprep.subr.mxu0 0.0
    %1062 = vmatpush1.msra.mxu0 0.0
    %1063 = vmatprep.mubr.f32.mxu0 0.0
    %1064 = vmatmul.mubr.f32.gmra.mrb[0].mxu0 %v926
    %v1065 = vpop.f32.mrb[0].mxu0
    %v1066 = vadd.f32 0.0, %v1065
    %v1067 = vpop.f32.mrb[0].mxu0
    %1068 = vdwg.mxu0
    %1069 = vmatprep.subr.mxu0 0.0
    %1070 = vmatpush1.msra.mxu0 %v108
    %1071 = vmatprep.subr.mxu0 0.0
    %1072 = vmatpush1.msra.mxu0 %v109
    %1073 = vmatprep.subr.mxu0 0.0
    %1074 = vmatpush1.msra.mxu0 %v110
    %1075 = vmatprep.subr.mxu0 0.0
    %1076 = vmatpush1.msra.mxu0 %v111
    %1077 = vmatprep.subr.mxu0 0.0
    %1078 = vmatpush1.msra.mxu0 %v112
    %1079 = vmatprep.subr.mxu0 0.0
    %1080 = vmatpush1.msra.mxu0 %v113
    %1081 = vmatprep.subr.mxu0 0.0
    %1082 = vmatpush1.msra.mxu0 %v114
    %1083 = vmatprep.subr.mxu0 0.0
    %1084 = vmatpush1.msra.mxu0 %v115
    %1085 = vmatprep.subr.mxu0 0.0
    %1086 = vmatpush1.msra.mxu0 %v116
    %1087 = vmatprep.subr.mxu0 0.0
    %1088 = vmatpush1.msra.mxu0 %v117
    %1089 = vmatprep.subr.mxu0 0.0
    %1090 = vmatpush1.msra.mxu0 %v118
    %1091 = vmatprep.subr.mxu0 0.0
    %1092 = vmatpush1.msra.mxu0 %v119
    %1093 = vmatprep.subr.mxu0 0.0
    %1094 = vmatpush1.msra.mxu0 %v120
    %1095 = vmatprep.subr.mxu0 0.0
    %1096 = vmatpush1.msra.mxu0 %v121
    %1097 = vmatprep.subr.mxu0 0.0
    %1098 = vmatpush1.msra.mxu0 %v122
    %1099 = vmatprep.subr.mxu0 0.0
    %1100 = vmatpush1.msra.mxu0 %v123
    %1101 = vmatprep.subr.mxu0 0.0
    %1102 = vmatpush1.msra.mxu0 0.0
    %1103 = vmatprep.subr.mxu0 0.0
    %1104 = vmatpush1.msra.mxu0 0.0
    %1105 = vmatprep.subr.mxu0 0.0
    %1106 = vmatpush1.msra.mxu0 0.0
    %1107 = vmatprep.subr.mxu0 0.0
    %1108 = vmatpush1.msra.mxu0 0.0
    %1109 = vmatprep.subr.mxu0 0.0
    %1110 = vmatpush1.msra.mxu0 0.0
    %1111 = vmatprep.subr.mxu0 0.0
    %1112 = vmatpush1.msra.mxu0 0.0
    %1113 = vmatprep.subr.mxu0 0.0
    %1114 = vmatpush1.msra.mxu0 0.0
    %1115 = vmatprep.subr.mxu0 0.0
    %1116 = vmatpush1.msra.mxu0 0.0
    %1117 = vmatprep.subr.mxu0 0.0
    %1118 = vmatpush1.msra.mxu0 0.0
    %1119 = vmatprep.subr.mxu0 0.0
    %1120 = vmatpush1.msra.mxu0 0.0
    %1121 = vmatprep.subr.mxu0 0.0
    %1122 = vmatpush1.msra.mxu0 0.0
    %1123 = vmatprep.subr.mxu0 0.0
    %1124 = vmatpush1.msra.mxu0 0.0
    %1125 = vmatprep.subr.mxu0 0.0
    %1126 = vmatpush1.msra.mxu0 0.0
    %1127 = vmatprep.subr.mxu0 0.0
    %1128 = vmatpush1.msra.mxu0 0.0
    %1129 = vmatprep.subr.mxu0 0.0
    %1130 = vmatpush1.msra.mxu0 0.0
    %1131 = vmatprep.subr.mxu0 0.0
    %1132 = vmatpush1.msra.mxu0 0.0
    %1133 = vmatprep.mubr.f32.mxu0 0.0
    %1134 = vmatmul.mubr.f32.gmra.mrb[0].mxu0 %v998
    %v1135 = vpop.f32.mrb[0].mxu0
    %v1136 = vadd.f32 %v1066, %v1135
    %v1137 = vpop.f32.mrb[0].mxu0
    %1138 = vdwg.mxu0
    %v1139 = vadd.f32 %v1136, %v158
    %v1140 = vtanh.pop %v1139
    %1141 = vmatprep.subr.mxu0 0.0
    %1142 = vmatpush1.msra.mxu0 %v92
    %1143 = vmatprep.subr.mxu0 0.0
    %1144 = vmatpush1.msra.mxu0 %v93
    %1145 = vmatprep.subr.mxu0 0.0
    %1146 = vmatpush1.msra.mxu0 %v94
    %1147 = vmatprep.subr.mxu0 0.0
    %1148 = vmatpush1.msra.mxu0 %v95
    %1149 = vmatprep.subr.mxu0 0.0
    %1150 = vmatpush1.msra.mxu0 %v96
    %1151 = vmatprep.subr.mxu0 0.0
    %1152 = vmatpush1.msra.mxu0 %v97
    %1153 = vmatprep.subr.mxu0 0.0
    %1154 = vmatpush1.msra.mxu0 %v98
    %1155 = vmatprep.subr.mxu0 0.0
    %1156 = vmatpush1.msra.mxu0 %v99
    %1157 = vmatprep.subr.mxu0 0.0
    %1158 = vmatpush1.msra.mxu0 %v100
    %1159 = vmatprep.subr.mxu0 0.0
    %1160 = vmatpush1.msra.mxu0 %v101
    %1161 = vmatprep.subr.mxu0 0.0
    %1162 = vmatpush1.msra.mxu0 %v102
    %1163 = vmatprep.subr.mxu0 0.0
    %1164 = vmatpush1.msra.mxu0 %v103
    %1165 = vmatprep.subr.mxu0 0.0
    %1166 = vmatpush1.msra.mxu0 %v104
    %1167 = vmatprep.subr.mxu0 0.0
    %1168 = vmatpush1.msra.mxu0 %v105
    %1169 = vmatprep.subr.mxu0 0.0
    %1170 = vmatpush1.msra.mxu0 %v106
    %1171 = vmatprep.subr.mxu0 0.0
    %1172 = vmatpush1.msra.mxu0 %v107
    %1173 = vmatprep.subr.mxu0 0.0
    %1174 = vmatpush1.msra.mxu0 0.0
    %1175 = vmatprep.subr.mxu0 0.0
    %1176 = vmatpush1.msra.mxu0 0.0
    %1177 = vmatprep.subr.mxu0 0.0
    %1178 = vmatpush1.msra.mxu0 0.0
    %1179 = vmatprep.subr.mxu0 0.0
    %1180 = vmatpush1.msra.mxu0 0.0
    %1181 = vmatprep.subr.mxu0 0.0
    %1182 = vmatpush1.msra.mxu0 0.0
    %1183 = vmatprep.subr.mxu0 0.0
    %1184 = vmatpush1.msra.mxu0 0.0
    %1185 = vmatprep.subr.mxu0 0.0
    %1186 = vmatpush1.msra.mxu0 0.0
    %1187 = vmatprep.subr.mxu0 0.0
    %1188 = vmatpush1.msra.mxu0 0.0
    %1189 = vmatprep.subr.mxu0 0.0
    %1190 = vmatpush1.msra.mxu0 0.0
    %1191 = vmatprep.subr.mxu0 0.0
    %1192 = vmatpush1.msra.mxu0 0.0
    %1193 = vmatprep.subr.mxu0 0.0
    %1194 = vmatpush1.msra.mxu0 0.0
    %1195 = vmatprep.subr.mxu0 0.0
    %1196 = vmatpush1.msra.mxu0 0.0
    %1197 = vmatprep.subr.mxu0 0.0
    %1198 = vmatpush1.msra.mxu0 0.0
    %1199 = vmatprep.subr.mxu0 0.0
    %1200 = vmatpush1.msra.mxu0 0.0
    %1201 = vmatprep.subr.mxu0 0.0
    %1202 = vmatpush1.msra.mxu0 0.0
    %1203 = vmatprep.subr.mxu0 0.0
    %1204 = vmatpush1.msra.mxu0 0.0
    %1205 = vmatprep.mubr.f32.mxu0 0.0
    %1206 = vmatmul.mubr.f32.gmra.mrb[0].mxu0 %v998
    %v1207 = vpop.f32.mrb[0].mxu0
    %v1208 = vadd.f32 0.0, %v1207
    %v1209 = vpop.f32.mrb[0].mxu0
    %1210 = vdwg.mxu0
    %v1211 = vadd.f32 %v278, %v1208
    %v1212 = vtanh.pop %v1211
    %1213 = vmatprep.subr.mxu0 0.0
    %1214 = vmatpush1.msra.mxu0 %v124
    %1215 = vmatprep.subr.mxu0 0.0
    %1216 = vmatpush1.msra.mxu0 %v125
    %1217 = vmatprep.subr.mxu0 0.0
    %1218 = vmatpush1.msra.mxu0 %v126
    %1219 = vmatprep.subr.mxu0 0.0
    %1220 = vmatpush1.msra.mxu0 %v127
    %1221 = vmatprep.subr.mxu0 0.0
    %1222 = vmatpush1.msra.mxu0 %v128
    %1223 = vmatprep.subr.mxu0 0.0
    %1224 = vmatpush1.msra.mxu0 %v129
    %1225 = vmatprep.subr.mxu0 0.0
    %1226 = vmatpush1.msra.mxu0 %v130
    %1227 = vmatprep.subr.mxu0 0.0
    %1228 = vmatpush1.msra.mxu0 %v131
    %1229 = vmatprep.subr.mxu0 0.0
    %1230 = vmatpush1.msra.mxu0 %v132
    %1231 = vmatprep.subr.mxu0 0.0
    %1232 = vmatpush1.msra.mxu0 %v133
    %1233 = vmatprep.subr.mxu0 0.0
    %1234 = vmatpush1.msra.mxu0 %v134
    %1235 = vmatprep.subr.mxu0 0.0
    %1236 = vmatpush1.msra.mxu0 %v135
    %1237 = vmatprep.subr.mxu0 0.0
    %1238 = vmatpush1.msra.mxu0 %v136
    %1239 = vmatprep.subr.mxu0 0.0
    %1240 = vmatpush1.msra.mxu0 %v137
    %1241 = vmatprep.subr.mxu0 0.0
    %1242 = vmatpush1.msra.mxu0 %v138
    %1243 = vmatprep.subr.mxu0 0.0
    %1244 = vmatpush1.msra.mxu0 %v139
    %1245 = vmatprep.subr.mxu0 0.0
    %1246 = vmatpush1.msra.mxu0 0.0
    %1247 = vmatprep.subr.mxu0 0.0
    %1248 = vmatpush1.msra.mxu0 0.0
    %1249 = vmatprep.subr.mxu0 0.0
    %1250 = vmatpush1.msra.mxu0 0.0
    %1251 = vmatprep.subr.mxu0 0.0
    %1252 = vmatpush1.msra.mxu0 0.0
    %1253 = vmatprep.subr.mxu0 0.0
    %1254 = vmatpush1.msra.mxu0 0.0
    %1255 = vmatprep.subr.mxu0 0.0
    %1256 = vmatpush1.msra.mxu0 0.0
    %1257 = vmatprep.subr.mxu0 0.0
    %1258 = vmatpush1.msra.mxu0 0.0
    %1259 = vmatprep.subr.mxu0 0.0
    %1260 = vmatpush1.msra.mxu0 0.0
    %1261 = vmatprep.subr.mxu0 0.0
    %1262 = vmatpush1.msra.mxu0 0.0
    %1263 = vmatprep.subr.mxu0 0.0
    %1264 = vmatpush1.msra.mxu0 0.0
    %1265 = vmatprep.subr.mxu0 0.0
    %1266 = vmatpush1.msra.mxu0 0.0
    %1267 = vmatprep.subr.mxu0 0.0
    %1268 = vmatpush1.msra.mxu0 0.0
    %1269 = vmatprep.subr.mxu0 0.0
    %1270 = vmatpush1.msra.mxu0 0.0
    %1271 = vmatprep.subr.mxu0 0.0
    %1272 = vmatpush1.msra.mxu0 0.0
    %1273 = vmatprep.subr.mxu0 0.0
    %1274 = vmatpush1.msra.mxu0 0.0
    %1275 = vmatprep.subr.mxu0 0.0
    %1276 = vmatpush1.msra.mxu0 0.0
    %1277 = vmatprep.mubr.f32.mxu0 0.0
    %1278 = vmatmul.mubr.f32.gmra.mrb[0].mxu0 %v1140
    %v1279 = vpop.f32.mrb[0].mxu0
    %v1280 = vadd.f32 0.0, %v1279
    %v1281 = vpop.f32.mrb[0].mxu0
    %1282 = vdwg.mxu0
    %1283 = vmatprep.subr.mxu0 0.0
    %1284 = vmatpush1.msra.mxu0 %v108
    %1285 = vmatprep.subr.mxu0 0.0
    %1286 = vmatpush1.msra.mxu0 %v109
    %1287 = vmatprep.subr.mxu0 0.0
    %1288 = vmatpush1.msra.mxu0 %v110
    %1289 = vmatprep.subr.mxu0 0.0
    %1290 = vmatpush1.msra.mxu0 %v111
    %1291 = vmatprep.subr.mxu0 0.0
    %1292 = vmatpush1.msra.mxu0 %v112
    %1293 = vmatprep.subr.mxu0 0.0
    %1294 = vmatpush1.msra.mxu0 %v113
    %1295 = vmatprep.subr.mxu0 0.0
    %1296 = vmatpush1.msra.mxu0 %v114
    %1297 = vmatprep.subr.mxu0 0.0
    %1298 = vmatpush1.msra.mxu0 %v115
    %1299 = vmatprep.subr.mxu0 0.0
    %1300 = vmatpush1.msra.mxu0 %v116
    %1301 = vmatprep.subr.mxu0 0.0
    %1302 = vmatpush1.msra.mxu0 %v117
    %1303 = vmatprep.subr.mxu0 0.0
    %1304 = vmatpush1.msra.mxu0 %v118
    %1305 = vmatprep.subr.mxu0 0.0
    %1306 = vmatpush1.msra.mxu0 %v119
    %1307 = vmatprep.subr.mxu0 0.0
    %1308 = vmatpush1.msra.mxu0 %v120
    %1309 = vmatprep.subr.mxu0 0.0
    %1310 = vmatpush1.msra.mxu0 %v121
    %1311 = vmatprep.subr.mxu0 0.0
    %1312 = vmatpush1.msra.mxu0 %v122
    %1313 = vmatprep.subr.mxu0 0.0
    %1314 = vmatpush1.msra.mxu0 %v123
    %1315 = vmatprep.subr.mxu0 0.0
    %1316 = vmatpush1.msra.mxu0 0.0
    %1317 = vmatprep.subr.mxu0 0.0
    %1318 = vmatpush1.msra.mxu0 0.0
    %1319 = vmatprep.subr.mxu0 0.0
    %1320 = vmatpush1.msra.mxu0 0.0
    %1321 = vmatprep.subr.mxu0 0.0
    %1322 = vmatpush1.msra.mxu0 0.0
    %1323 = vmatprep.subr.mxu0 0.0
    %1324 = vmatpush1.msra.mxu0 0.0
    %1325 = vmatprep.subr.mxu0 0.0
    %1326 = vmatpush1.msra.mxu0 0.0
    %1327 = vmatprep.subr.mxu0 0.0
    %1328 = vmatpush1.msra.mxu0 0.0
    %1329 = vmatprep.subr.mxu0 0.0
    %1330 = vmatpush1.msra.mxu0 0.0
    %1331 = vmatprep.subr.mxu0 0.0
    %1332 = vmatpush1.msra.mxu0 0.0
    %1333 = vmatprep.subr.mxu0 0.0
    %1334 = vmatpush1.msra.mxu0 0.0
    %1335 = vmatprep.subr.mxu0 0.0
    %1336 = vmatpush1.msra.mxu0 0.0
    %1337 = vmatprep.subr.mxu0 0.0
    %1338 = vmatpush1.msra.mxu0 0.0
    %1339 = vmatprep.subr.mxu0 0.0
    %1340 = vmatpush1.msra.mxu0 0.0
    %1341 = vmatprep.subr.mxu0 0.0
    %1342 = vmatpush1.msra.mxu0 0.0
    %1343 = vmatprep.subr.mxu0 0.0
    %1344 = vmatpush1.msra.mxu0 0.0
    %1345 = vmatprep.subr.mxu0 0.0
    %1346 = vmatpush1.msra.mxu0 0.0
    %1347 = vmatprep.mubr.f32.mxu0 0.0
    %1348 = vmatmul.mubr.f32.gmra.mrb[0].mxu0 %v1212
    %v1349 = vpop.f32.mrb[0].mxu0
    %v1350 = vadd.f32 %v1280, %v1349
    %v1351 = vpop.f32.mrb[0].mxu0
    %1352 = vdwg.mxu0
    %v1353 = vadd.f32 %v1350, %v158
    %v1354 = vtanh.pop %v1353
    %1355 = vmatprep.subr.mxu0 0.0
    %1356 = vmatpush1.msra.mxu0 %v92
    %1357 = vmatprep.subr.mxu0 0.0
    %1358 = vmatpush1.msra.mxu0 %v93
    %1359 = vmatprep.subr.mxu0 0.0
    %1360 = vmatpush1.msra.mxu0 %v94
    %1361 = vmatprep.subr.mxu0 0.0
    %1362 = vmatpush1.msra.mxu0 %v95
    %1363 = vmatprep.subr.mxu0 0.0
    %1364 = vmatpush1.msra.mxu0 %v96
    %1365 = vmatprep.subr.mxu0 0.0
    %1366 = vmatpush1.msra.mxu0 %v97
    %1367 = vmatprep.subr.mxu0 0.0
    %1368 = vmatpush1.msra.mxu0 %v98
    %1369 = vmatprep.subr.mxu0 0.0
    %1370 = vmatpush1.msra.mxu0 %v99
    %1371 = vmatprep.subr.mxu0 0.0
    %1372 = vmatpush1.msra.mxu0 %v100
    %1373 = vmatprep.subr.mxu0 0.0
    %1374 = vmatpush1.msra.mxu0 %v101
    %1375 = vmatprep.subr.mxu0 0.0
    %1376 = vmatpush1.msra.mxu0 %v102
    %1377 = vmatprep.subr.mxu0 0.0
    %1378 = vmatpush1.msra.mxu0 %v103
    %1379 = vmatprep.subr.mxu0 0.0
    %1380 = vmatpush1.msra.mxu0 %v104
    %1381 = vmatprep.subr.mxu0 0.0
    %1382 = vmatpush1.msra.mxu0 %v105
    %1383 = vmatprep.subr.mxu0 0.0
    %1384 = vmatpush1.msra.mxu0 %v106
    %1385 = vmatprep.subr.mxu0 0.0
    %1386 = vmatpush1.msra.mxu0 %v107
    %1387 = vmatprep.subr.mxu0 0.0
    %1388 = vmatpush1.msra.mxu0 0.0
    %1389 = vmatprep.subr.mxu0 0.0
    %1390 = vmatpush1.msra.mxu0 0.0
    %1391 = vmatprep.subr.mxu0 0.0
    %1392 = vmatpush1.msra.mxu0 0.0
    %1393 = vmatprep.subr.mxu0 0.0
    %1394 = vmatpush1.msra.mxu0 0.0
    %1395 = vmatprep.subr.mxu0 0.0
    %1396 = vmatpush1.msra.mxu0 0.0
    %1397 = vmatprep.subr.mxu0 0.0
    %1398 = vmatpush1.msra.mxu0 0.0
    %1399 = vmatprep.subr.mxu0 0.0
    %1400 = vmatpush1.msra.mxu0 0.0
    %1401 = vmatprep.subr.mxu0 0.0
    %1402 = vmatpush1.msra.mxu0 0.0
    %1403 = vmatprep.subr.mxu0 0.0
    %1404 = vmatpush1.msra.mxu0 0.0
    %1405 = vmatprep.subr.mxu0 0.0
    %1406 = vmatpush1.msra.mxu0 0.0
    %1407 = vmatprep.subr.mxu0 0.0
    %1408 = vmatpush1.msra.mxu0 0.0
    %1409 = vmatprep.subr.mxu0 0.0
    %1410 = vmatpush1.msra.mxu0 0.0
    %1411 = vmatprep.subr.mxu0 0.0
    %1412 = vmatpush1.msra.mxu0 0.0
    %1413 = vmatprep.subr.mxu0 0.0
    %1414 = vmatpush1.msra.mxu0 0.0
    %1415 = vmatprep.subr.mxu0 0.0
    %1416 = vmatpush1.msra.mxu0 0.0
    %1417 = vmatprep.subr.mxu0 0.0
    %1418 = vmatpush1.msra.mxu0 0.0
    %1419 = vmatprep.mubr.f32.mxu0 0.0
    %1420 = vmatmul.mubr.f32.gmra.mrb[0].mxu0 %v1212
    %v1421 = vpop.f32.mrb[0].mxu0
    %v1422 = vadd.f32 0.0, %v1421
    %v1423 = vpop.f32.mrb[0].mxu0
    %1424 = vdwg.mxu0
    %v1425 = vadd.f32 %v279, %v1422
    %v1426 = vtanh.pop %v1425
    %1427 = vmatprep.subr.mxu0 0.0
    %1428 = vmatpush1.msra.mxu0 %v124
    %1429 = vmatprep.subr.mxu0 0.0
    %1430 = vmatpush1.msra.mxu0 %v125
    %1431 = vmatprep.subr.mxu0 0.0
    %1432 = vmatpush1.msra.mxu0 %v126
    %1433 = vmatprep.subr.mxu0 0.0
    %1434 = vmatpush1.msra.mxu0 %v127
    %1435 = vmatprep.subr.mxu0 0.0
    %1436 = vmatpush1.msra.mxu0 %v128
    %1437 = vmatprep.subr.mxu0 0.0
    %1438 = vmatpush1.msra.mxu0 %v129
    %1439 = vmatprep.subr.mxu0 0.0
    %1440 = vmatpush1.msra.mxu0 %v130
    %1441 = vmatprep.subr.mxu0 0.0
    %1442 = vmatpush1.msra.mxu0 %v131
    %1443 = vmatprep.subr.mxu0 0.0
    %1444 = vmatpush1.msra.mxu0 %v132
    %1445 = vmatprep.subr.mxu0 0.0
    %1446 = vmatpush1.msra.mxu0 %v133
    %1447 = vmatprep.subr.mxu0 0.0
    %1448 = vmatpush1.msra.mxu0 %v134
    %1449 = vmatprep.subr.mxu0 0.0
    %1450 = vmatpush1.msra.mxu0 %v135
    %1451 = vmatprep.subr.mxu0 0.0
    %1452 = vmatpush1.msra.mxu0 %v136
    %1453 = vmatprep.subr.mxu0 0.0
    %1454 = vmatpush1.msra.mxu0 %v137
    %1455 = vmatprep.subr.mxu0 0.0
    %1456 = vmatpush1.msra.mxu0 %v138
    %1457 = vmatprep.subr.mxu0 0.0
    %1458 = vmatpush1.msra.mxu0 %v139
    %1459 = vmatprep.subr.mxu0 0.0
    %1460 = vmatpush1.msra.mxu0 0.0
    %1461 = vmatprep.subr.mxu0 0.0
    %1462 = vmatpush1.msra.mxu0 0.0
    %1463 = vmatprep.subr.mxu0 0.0
    %1464 = vmatpush1.msra.mxu0 0.0
    %1465 = vmatprep.subr.mxu0 0.0
    %1466 = vmatpush1.msra.mxu0 0.0
    %1467 = vmatprep.subr.mxu0 0.0
    %1468 = vmatpush1.msra.mxu0 0.0
    %1469 = vmatprep.subr.mxu0 0.0
    %1470 = vmatpush1.msra.mxu0 0.0
    %1471 = vmatprep.subr.mxu0 0.0
    %1472 = vmatpush1.msra.mxu0 0.0
    %1473 = vmatprep.subr.mxu0 0.0
    %1474 = vmatpush1.msra.mxu0 0.0
    %1475 = vmatprep.subr.mxu0 0.0
    %1476 = vmatpush1.msra.mxu0 0.0
    %1477 = vmatprep.subr.mxu0 0.0
    %1478 = vmatpush1.msra.mxu0 0.0
    %1479 = vmatprep.subr.mxu0 0.0
    %1480 = vmatpush1.msra.mxu0 0.0
    %1481 = vmatprep.subr.mxu0 0.0
    %1482 = vmatpush1.msra.mxu0 0.0
    %1483 = vmatprep.subr.mxu0 0.0
    %1484 = vmatpush1.msra.mxu0 0.0
    %1485 = vmatprep.subr.mxu0 0.0
    %1486 = vmatpush1.msra.mxu0 0.0
    %1487 = vmatprep.subr.mxu0 0.0
    %1488 = vmatpush1.msra.mxu0 0.0
    %1489 = vmatprep.subr.mxu0 0.0
    %1490 = vmatpush1.msra.mxu0 0.0
    %1491 = vmatprep.mubr.f32.mxu0 0.0
    %1492 = vmatmul.mubr.f32.gmra.mrb[0].mxu0 %v1354
    %v1493 = vpop.f32.mrb[0].mxu0
    %v1494 = vadd.f32 0.0, %v1493
    %v1495 = vpop.f32.mrb[0].mxu0
    %1496 = vdwg.mxu0
    %1497 = vmatprep.subr.mxu0 0.0
    %1498 = vmatpush1.msra.mxu0 %v108
    %1499 = vmatprep.subr.mxu0 0.0
    %1500 = vmatpush1.msra.mxu0 %v109
    %1501 = vmatprep.subr.mxu0 0.0
    %1502 = vmatpush1.msra.mxu0 %v110
    %1503 = vmatprep.subr.mxu0 0.0
    %1504 = vmatpush1.msra.mxu0 %v111
    %1505 = vmatprep.subr.mxu0 0.0
    %1506 = vmatpush1.msra.mxu0 %v112
    %1507 = vmatprep.subr.mxu0 0.0
    %1508 = vmatpush1.msra.mxu0 %v113
    %1509 = vmatprep.subr.mxu0 0.0
    %1510 = vmatpush1.msra.mxu0 %v114
    %1511 = vmatprep.subr.mxu0 0.0
    %1512 = vmatpush1.msra.mxu0 %v115
    %1513 = vmatprep.subr.mxu0 0.0
    %1514 = vmatpush1.msra.mxu0 %v116
    %1515 = vmatprep.subr.mxu0 0.0
    %1516 = vmatpush1.msra.mxu0 %v117
    %1517 = vmatprep.subr.mxu0 0.0
    %1518 = vmatpush1.msra.mxu0 %v118
    %1519 = vmatprep.subr.mxu0 0.0
    %1520 = vmatpush1.msra.mxu0 %v119
    %1521 = vmatprep.subr.mxu0 0.0
    %1522 = vmatpush1.msra.mxu0 %v120
    %1523 = vmatprep.subr.mxu0 0.0
    %1524 = vmatpush1.msra.mxu0 %v121
    %1525 = vmatprep.subr.mxu0 0.0
    %1526 = vmatpush1.msra.mxu0 %v122
    %1527 = vmatprep.subr.mxu0 0.0
    %1528 = vmatpush1.msra.mxu0 %v123
    %1529 = vmatprep.subr.mxu0 0.0
    %1530 = vmatpush1.msra.mxu0 0.0
    %1531 = vmatprep.subr.mxu0 0.0
    %1532 = vmatpush1.msra.mxu0 0.0
    %1533 = vmatprep.subr.mxu0 0.0
    %1534 = vmatpush1.msra.mxu0 0.0
    %1535 = vmatprep.subr.mxu0 0.0
    %1536 = vmatpush1.msra.mxu0 0.0
    %1537 = vmatprep.subr.mxu0 0.0
    %1538 = vmatpush1.msra.mxu0 0.0
    %1539 = vmatprep.subr.mxu0 0.0
    %1540 = vmatpush1.msra.mxu0 0.0
    %1541 = vmatprep.subr.mxu0 0.0
    %1542 = vmatpush1.msra.mxu0 0.0
    %1543 = vmatprep.subr.mxu0 0.0
    %1544 = vmatpush1.msra.mxu0 0.0
    %1545 = vmatprep.subr.mxu0 0.0
    %1546 = vmatpush1.msra.mxu0 0.0
    %1547 = vmatprep.subr.mxu0 0.0
    %1548 = vmatpush1.msra.mxu0 0.0
    %1549 = vmatprep.subr.mxu0 0.0
    %1550 = vmatpush1.msra.mxu0 0.0
    %1551 = vmatprep.subr.mxu0 0.0
    %1552 = vmatpush1.msra.mxu0 0.0
    %1553 = vmatprep.subr.mxu0 0.0
    %1554 = vmatpush1.msra.mxu0 0.0
    %1555 = vmatprep.subr.mxu0 0.0
    %1556 = vmatpush1.msra.mxu0 0.0
    %1557 = vmatprep.subr.mxu0 0.0
    %1558 = vmatpush1.msra.mxu0 0.0
    %1559 = vmatprep.subr.mxu0 0.0
    %1560 = vmatpush1.msra.mxu0 0.0
    %1561 = vmatprep.mubr.f32.mxu0 0.0
    %1562 = vmatmul.mubr.f32.gmra.mrb[0].mxu0 %v1426
    %v1563 = vpop.f32.mrb[0].mxu0
    %v1564 = vadd.f32 %v1494, %v1563
    %v1565 = vpop.f32.mrb[0].mxu0
    %1566 = vdwg.mxu0
    %v1567 = vadd.f32 %v1564, %v158
    %v1568 = vtanh.pop %v1567
    %1569 = vmatprep.subr.mxu0 0.0
    %1570 = vmatpush1.msra.mxu0 %v92
    %1571 = vmatprep.subr.mxu0 0.0
    %1572 = vmatpush1.msra.mxu0 %v93
    %1573 = vmatprep.subr.mxu0 0.0
    %1574 = vmatpush1.msra.mxu0 %v94
    %1575 = vmatprep.subr.mxu0 0.0
    %1576 = vmatpush1.msra.mxu0 %v95
    %1577 = vmatprep.subr.mxu0 0.0
    %1578 = vmatpush1.msra.mxu0 %v96
    %1579 = vmatprep.subr.mxu0 0.0
    %1580 = vmatpush1.msra.mxu0 %v97
    %1581 = vmatprep.subr.mxu0 0.0
    %1582 = vmatpush1.msra.mxu0 %v98
    %1583 = vmatprep.subr.mxu0 0.0
    %1584 = vmatpush1.msra.mxu0 %v99
    %1585 = vmatprep.subr.mxu0 0.0
    %1586 = vmatpush1.msra.mxu0 %v100
    %1587 = vmatprep.subr.mxu0 0.0
    %1588 = vmatpush1.msra.mxu0 %v101
    %1589 = vmatprep.subr.mxu0 0.0
    %1590 = vmatpush1.msra.mxu0 %v102
    %1591 = vmatprep.subr.mxu0 0.0
    %1592 = vmatpush1.msra.mxu0 %v103
    %1593 = vmatprep.subr.mxu0 0.0
    %1594 = vmatpush1.msra.mxu0 %v104
    %1595 = vmatprep.subr.mxu0 0.0
    %1596 = vmatpush1.msra.mxu0 %v105
    %1597 = vmatprep.subr.mxu0 0.0
    %1598 = vmatpush1.msra.mxu0 %v106
    %1599 = vmatprep.subr.mxu0 0.0
    %1600 = vmatpush1.msra.mxu0 %v107
    %1601 = vmatprep.subr.mxu0 0.0
    %1602 = vmatpush1.msra.mxu0 0.0
    %1603 = vmatprep.subr.mxu0 0.0
    %1604 = vmatpush1.msra.mxu0 0.0
    %1605 = vmatprep.subr.mxu0 0.0
    %1606 = vmatpush1.msra.mxu0 0.0
    %1607 = vmatprep.subr.mxu0 0.0
    %1608 = vmatpush1.msra.mxu0 0.0
    %1609 = vmatprep.subr.mxu0 0.0
    %1610 = vmatpush1.msra.mxu0 0.0
    %1611 = vmatprep.subr.mxu0 0.0
    %1612 = vmatpush1.msra.mxu0 0.0
    %1613 = vmatprep.subr.mxu0 0.0
    %1614 = vmatpush1.msra.mxu0 0.0
    %1615 = vmatprep.subr.mxu0 0.0
    %1616 = vmatpush1.msra.mxu0 0.0
    %1617 = vmatprep.subr.mxu0 0.0
    %1618 = vmatpush1.msra.mxu0 0.0
    %1619 = vmatprep.subr.mxu0 0.0
    %1620 = vmatpush1.msra.mxu0 0.0
    %1621 = vmatprep.subr.mxu0 0.0
    %1622 = vmatpush1.msra.mxu0 0.0
    %1623 = vmatprep.subr.mxu0 0.0
    %1624 = vmatpush1.msra.mxu0 0.0
    %1625 = vmatprep.subr.mxu0 0.0
    %1626 = vmatpush1.msra.mxu0 0.0
    %1627 = vmatprep.subr.mxu0 0.0
    %1628 = vmatpush1.msra.mxu0 0.0
    %1629 = vmatprep.subr.mxu0 0.0
    %1630 = vmatpush1.msra.mxu0 0.0
    %1631 = vmatprep.subr.mxu0 0.0
    %1632 = vmatpush1.msra.mxu0 0.0
    %1633 = vmatprep.mubr.f32.mxu0 0.0
    %1634 = vmatmul.mubr.f32.gmra.mrb[0].mxu0 %v1426
    %v1635 = vpop.f32.mrb[0].mxu0
    %v1636 = vadd.f32 0.0, %v1635
    %v1637 = vpop.f32.mrb[0].mxu0
    %1638 = vdwg.mxu0
    %v1639 = vadd.f32 %v280, %v1636
    %v1640 = vtanh.pop %v1639
    %1641 = vmatprep.subr.mxu0 0.0
    %1642 = vmatpush1.msra.mxu0 %v124
    %1643 = vmatprep.subr.mxu0 0.0
    %1644 = vmatpush1.msra.mxu0 %v125
    %1645 = vmatprep.subr.mxu0 0.0
    %1646 = vmatpush1.msra.mxu0 %v126
    %1647 = vmatprep.subr.mxu0 0.0
    %1648 = vmatpush1.msra.mxu0 %v127
    %1649 = vmatprep.subr.mxu0 0.0
    %1650 = vmatpush1.msra.mxu0 %v128
    %1651 = vmatprep.subr.mxu0 0.0
    %1652 = vmatpush1.msra.mxu0 %v129
    %1653 = vmatprep.subr.mxu0 0.0
    %1654 = vmatpush1.msra.mxu0 %v130
    %1655 = vmatprep.subr.mxu0 0.0
    %1656 = vmatpush1.msra.mxu0 %v131
    %1657 = vmatprep.subr.mxu0 0.0
    %1658 = vmatpush1.msra.mxu0 %v132
    %1659 = vmatprep.subr.mxu0 0.0
    %1660 = vmatpush1.msra.mxu0 %v133
    %1661 = vmatprep.subr.mxu0 0.0
    %1662 = vmatpush1.msra.mxu0 %v134
    %1663 = vmatprep.subr.mxu0 0.0
    %1664 = vmatpush1.msra.mxu0 %v135
    %1665 = vmatprep.subr.mxu0 0.0
    %1666 = vmatpush1.msra.mxu0 %v136
    %1667 = vmatprep.subr.mxu0 0.0
    %1668 = vmatpush1.msra.mxu0 %v137
    %1669 = vmatprep.subr.mxu0 0.0
    %1670 = vmatpush1.msra.mxu0 %v138
    %1671 = vmatprep.subr.mxu0 0.0
    %1672 = vmatpush1.msra.mxu0 %v139
    %1673 = vmatprep.subr.mxu0 0.0
    %1674 = vmatpush1.msra.mxu0 0.0
    %1675 = vmatprep.subr.mxu0 0.0
    %1676 = vmatpush1.msra.mxu0 0.0
    %1677 = vmatprep.subr.mxu0 0.0
    %1678 = vmatpush1.msra.mxu0 0.0
    %1679 = vmatprep.subr.mxu0 0.0
    %1680 = vmatpush1.msra.mxu0 0.0
    %1681 = vmatprep.subr.mxu0 0.0
    %1682 = vmatpush1.msra.mxu0 0.0
    %1683 = vmatprep.subr.mxu0 0.0
    %1684 = vmatpush1.msra.mxu0 0.0
    %1685 = vmatprep.subr.mxu0 0.0
    %1686 = vmatpush1.msra.mxu0 0.0
    %1687 = vmatprep.subr.mxu0 0.0
    %1688 = vmatpush1.msra.mxu0 0.0
    %1689 = vmatprep.subr.mxu0 0.0
    %1690 = vmatpush1.msra.mxu0 0.0
    %1691 = vmatprep.subr.mxu0 0.0
    %1692 = vmatpush1.msra.mxu0 0.0
    %1693 = vmatprep.subr.mxu0 0.0
    %1694 = vmatpush1.msra.mxu0 0.0
    %1695 = vmatprep.subr.mxu0 0.0
    %1696 = vmatpush1.msra.mxu0 0.0
    %1697 = vmatprep.subr.mxu0 0.0
    %1698 = vmatpush1.msra.mxu0 0.0
    %1699 = vmatprep.subr.mxu0 0.0
    %1700 = vmatpush1.msra.mxu0 0.0
    %1701 = vmatprep.subr.mxu0 0.0
    %1702 = vmatpush1.msra.mxu0 0.0
    %1703 = vmatprep.subr.mxu0 0.0
    %1704 = vmatpush1.msra.mxu0 0.0
    %1705 = vmatprep.mubr.f32.mxu0 0.0
    %1706 = vmatmul.mubr.f32.gmra.mrb[0].mxu0 %v1568
    %v1707 = vpop.f32.mrb[0].mxu0
    %v1708 = vadd.f32 0.0, %v1707
    %v1709 = vpop.f32.mrb[0].mxu0
    %1710 = vdwg.mxu0
    %1711 = vmatprep.subr.mxu0 0.0
    %1712 = vmatpush1.msra.mxu0 %v108
    %1713 = vmatprep.subr.mxu0 0.0
    %1714 = vmatpush1.msra.mxu0 %v109
    %1715 = vmatprep.subr.mxu0 0.0
    %1716 = vmatpush1.msra.mxu0 %v110
    %1717 = vmatprep.subr.mxu0 0.0
    %1718 = vmatpush1.msra.mxu0 %v111
    %1719 = vmatprep.subr.mxu0 0.0
    %1720 = vmatpush1.msra.mxu0 %v112
    %1721 = vmatprep.subr.mxu0 0.0
    %1722 = vmatpush1.msra.mxu0 %v113
    %1723 = vmatprep.subr.mxu0 0.0
    %1724 = vmatpush1.msra.mxu0 %v114
    %1725 = vmatprep.subr.mxu0 0.0
    %1726 = vmatpush1.msra.mxu0 %v115
    %1727 = vmatprep.subr.mxu0 0.0
    %1728 = vmatpush1.msra.mxu0 %v116
    %1729 = vmatprep.subr.mxu0 0.0
    %1730 = vmatpush1.msra.mxu0 %v117
    %1731 = vmatprep.subr.mxu0 0.0
    %1732 = vmatpush1.msra.mxu0 %v118
    %1733 = vmatprep.subr.mxu0 0.0
    %1734 = vmatpush1.msra.mxu0 %v119
    %1735 = vmatprep.subr.mxu0 0.0
    %1736 = vmatpush1.msra.mxu0 %v120
    %1737 = vmatprep.subr.mxu0 0.0
    %1738 = vmatpush1.msra.mxu0 %v121
    %1739 = vmatprep.subr.mxu0 0.0
    %1740 = vmatpush1.msra.mxu0 %v122
    %1741 = vmatprep.subr.mxu0 0.0
    %1742 = vmatpush1.msra.mxu0 %v123
    %1743 = vmatprep.subr.mxu0 0.0
    %1744 = vmatpush1.msra.mxu0 0.0
    %1745 = vmatprep.subr.mxu0 0.0
    %1746 = vmatpush1.msra.mxu0 0.0
    %1747 = vmatprep.subr.mxu0 0.0
    %1748 = vmatpush1.msra.mxu0 0.0
    %1749 = vmatprep.subr.mxu0 0.0
    %1750 = vmatpush1.msra.mxu0 0.0
    %1751 = vmatprep.subr.mxu0 0.0
    %1752 = vmatpush1.msra.mxu0 0.0
    %1753 = vmatprep.subr.mxu0 0.0
    %1754 = vmatpush1.msra.mxu0 0.0
    %1755 = vmatprep.subr.mxu0 0.0
    %1756 = vmatpush1.msra.mxu0 0.0
    %1757 = vmatprep.subr.mxu0 0.0
    %1758 = vmatpush1.msra.mxu0 0.0
    %1759 = vmatprep.subr.mxu0 0.0
    %1760 = vmatpush1.msra.mxu0 0.0
    %1761 = vmatprep.subr.mxu0 0.0
    %1762 = vmatpush1.msra.mxu0 0.0
    %1763 = vmatprep.subr.mxu0 0.0
    %1764 = vmatpush1.msra.mxu0 0.0
    %1765 = vmatprep.subr.mxu0 0.0
    %1766 = vmatpush1.msra.mxu0 0.0
    %1767 = vmatprep.subr.mxu0 0.0
    %1768 = vmatpush1.msra.mxu0 0.0
    %1769 = vmatprep.subr.mxu0 0.0
    %1770 = vmatpush1.msra.mxu0 0.0
    %1771 = vmatprep.subr.mxu0 0.0
    %1772 = vmatpush1.msra.mxu0 0.0
    %1773 = vmatprep.subr.mxu0 0.0
    %1774 = vmatpush1.msra.mxu0 0.0
    %1775 = vmatprep.mubr.f32.mxu0 0.0
    %1776 = vmatmul.mubr.f32.gmra.mrb[0].mxu0 %v1640
    %v1777 = vpop.f32.mrb[0].mxu0
    %v1778 = vadd.f32 %v1708, %v1777
    %v1779 = vpop.f32.mrb[0].mxu0
    %1780 = vdwg.mxu0
    %v1781 = vadd.f32 %v1778, %v158
    %v1782 = vtanh.pop %v1781
    %1783 = vmatprep.subr.mxu0 0.0
    %1784 = vmatpush1.msra.mxu0 %v92
    %1785 = vmatprep.subr.mxu0 0.0
    %1786 = vmatpush1.msra.mxu0 %v93
    %1787 = vmatprep.subr.mxu0 0.0
    %1788 = vmatpush1.msra.mxu0 %v94
    %1789 = vmatprep.subr.mxu0 0.0
    %1790 = vmatpush1.msra.mxu0 %v95
    %1791 = vmatprep.subr.mxu0 0.0
    %1792 = vmatpush1.msra.mxu0 %v96
    %1793 = vmatprep.subr.mxu0 0.0
    %1794 = vmatpush1.msra.mxu0 %v97
    %1795 = vmatprep.subr.mxu0 0.0
    %1796 = vmatpush1.msra.mxu0 %v98
    %1797 = vmatprep.subr.mxu0 0.0
    %1798 = vmatpush1.msra.mxu0 %v99
    %1799 = vmatprep.subr.mxu0 0.0
    %1800 = vmatpush1.msra.mxu0 %v100
    %1801 = vmatprep.subr.mxu0 0.0
    %1802 = vmatpush1.msra.mxu0 %v101
    %1803 = vmatprep.subr.mxu0 0.0
    %1804 = vmatpush1.msra.mxu0 %v102
    %1805 = vmatprep.subr.mxu0 0.0
    %1806 = vmatpush1.msra.mxu0 %v103
    %1807 = vmatprep.subr.mxu0 0.0
    %1808 = vmatpush1.msra.mxu0 %v104
    %1809 = vmatprep.subr.mxu0 0.0
    %1810 = vmatpush1.msra.mxu0 %v105
    %1811 = vmatprep.subr.mxu0 0.0
    %1812 = vmatpush1.msra.mxu0 %v106
    %1813 = vmatprep.subr.mxu0 0.0
    %1814 = vmatpush1.msra.mxu0 %v107
    %1815 = vmatprep.subr.mxu0 0.0
    %1816 = vmatpush1.msra.mxu0 0.0
    %1817 = vmatprep.subr.mxu0 0.0
    %1818 = vmatpush1.msra.mxu0 0.0
    %1819 = vmatprep.subr.mxu0 0.0
    %1820 = vmatpush1.msra.mxu0 0.0
    %1821 = vmatprep.subr.mxu0 0.0
    %1822 = vmatpush1.msra.mxu0 0.0
    %1823 = vmatprep.subr.mxu0 0.0
    %1824 = vmatpush1.msra.mxu0 0.0
    %1825 = vmatprep.subr.mxu0 0.0
    %1826 = vmatpush1.msra.mxu0 0.0
    %1827 = vmatprep.subr.mxu0 0.0
    %1828 = vmatpush1.msra.mxu0 0.0
    %1829 = vmatprep.subr.mxu0 0.0
    %1830 = vmatpush1.msra.mxu0 0.0
    %1831 = vmatprep.subr.mxu0 0.0
    %1832 = vmatpush1.msra.mxu0 0.0
    %1833 = vmatprep.subr.mxu0 0.0
    %1834 = vmatpush1.msra.mxu0 0.0
    %1835 = vmatprep.subr.mxu0 0.0
    %1836 = vmatpush1.msra.mxu0 0.0
    %1837 = vmatprep.subr.mxu0 0.0
    %1838 = vmatpush1.msra.mxu0 0.0
    %1839 = vmatprep.subr.mxu0 0.0
    %1840 = vmatpush1.msra.mxu0 0.0
    %1841 = vmatprep.subr.mxu0 0.0
    %1842 = vmatpush1.msra.mxu0 0.0
    %1843 = vmatprep.subr.mxu0 0.0
    %1844 = vmatpush1.msra.mxu0 0.0
    %1845 = vmatprep.subr.mxu0 0.0
    %1846 = vmatpush1.msra.mxu0 0.0
    %1847 = vmatprep.mubr.f32.mxu0 0.0
    %1848 = vmatmul.mubr.f32.gmra.mrb[0].mxu0 %v1640
    %v1849 = vpop.f32.mrb[0].mxu0
    %v1850 = vadd.f32 0.0, %v1849
    %v1851 = vpop.f32.mrb[0].mxu0
    %1852 = vdwg.mxu0
    %v1853 = vadd.f32 %v281, %v1850
    %v1854 = vtanh.pop %v1853
    %1855 = vmatprep.subr.mxu0 0.0
    %1856 = vmatpush1.msra.mxu0 %v124
    %1857 = vmatprep.subr.mxu0 0.0
    %1858 = vmatpush1.msra.mxu0 %v125
    %1859 = vmatprep.subr.mxu0 0.0
    %1860 = vmatpush1.msra.mxu0 %v126
    %1861 = vmatprep.subr.mxu0 0.0
    %1862 = vmatpush1.msra.mxu0 %v127
    %1863 = vmatprep.subr.mxu0 0.0
    %1864 = vmatpush1.msra.mxu0 %v128
    %1865 = vmatprep.subr.mxu0 0.0
    %1866 = vmatpush1.msra.mxu0 %v129
    %1867 = vmatprep.subr.mxu0 0.0
    %1868 = vmatpush1.msra.mxu0 %v130
    %1869 = vmatprep.subr.mxu0 0.0
    %1870 = vmatpush1.msra.mxu0 %v131
    %1871 = vmatprep.subr.mxu0 0.0
    %1872 = vmatpush1.msra.mxu0 %v132
    %1873 = vmatprep.subr.mxu0 0.0
    %1874 = vmatpush1.msra.mxu0 %v133
    %1875 = vmatprep.subr.mxu0 0.0
    %1876 = vmatpush1.msra.mxu0 %v134
    %1877 = vmatprep.subr.mxu0 0.0
    %1878 = vmatpush1.msra.mxu0 %v135
    %1879 = vmatprep.subr.mxu0 0.0
    %1880 = vmatpush1.msra.mxu0 %v136
    %1881 = vmatprep.subr.mxu0 0.0
    %1882 = vmatpush1.msra.mxu0 %v137
    %1883 = vmatprep.subr.mxu0 0.0
    %1884 = vmatpush1.msra.mxu0 %v138
    %1885 = vmatprep.subr.mxu0 0.0
    %1886 = vmatpush1.msra.mxu0 %v139
    %1887 = vmatprep.subr.mxu0 0.0
    %1888 = vmatpush1.msra.mxu0 0.0
    %1889 = vmatprep.subr.mxu0 0.0
    %1890 = vmatpush1.msra.mxu0 0.0
    %1891 = vmatprep.subr.mxu0 0.0
    %1892 = vmatpush1.msra.mxu0 0.0
    %1893 = vmatprep.subr.mxu0 0.0
    %1894 = vmatpush1.msra.mxu0 0.0
    %1895 = vmatprep.subr.mxu0 0.0
    %1896 = vmatpush1.msra.mxu0 0.0
    %1897 = vmatprep.subr.mxu0 0.0
    %1898 = vmatpush1.msra.mxu0 0.0
    %1899 = vmatprep.subr.mxu0 0.0
    %1900 = vmatpush1.msra.mxu0 0.0
    %1901 = vmatprep.subr.mxu0 0.0
    %1902 = vmatpush1.msra.mxu0 0.0
    %1903 = vmatprep.subr.mxu0 0.0
    %1904 = vmatpush1.msra.mxu0 0.0
    %1905 = vmatprep.subr.mxu0 0.0
    %1906 = vmatpush1.msra.mxu0 0.0
    %1907 = vmatprep.subr.mxu0 0.0
    %1908 = vmatpush1.msra.mxu0 0.0
    %1909 = vmatprep.subr.mxu0 0.0
    %1910 = vmatpush1.msra.mxu0 0.0
    %1911 = vmatprep.subr.mxu0 0.0
    %1912 = vmatpush1.msra.mxu0 0.0
    %1913 = vmatprep.subr.mxu0 0.0
    %1914 = vmatpush1.msra.mxu0 0.0
    %1915 = vmatprep.subr.mxu0 0.0
    %1916 = vmatpush1.msra.mxu0 0.0
    %1917 = vmatprep.subr.mxu0 0.0
    %1918 = vmatpush1.msra.mxu0 0.0
    %1919 = vmatprep.mubr.f32.mxu0 0.0
    %1920 = vmatmul.mubr.f32.gmra.mrb[0].mxu0 %v1782
    %v1921 = vpop.f32.mrb[0].mxu0
    %v1922 = vadd.f32 0.0, %v1921
    %v1923 = vpop.f32.mrb[0].mxu0
    %1924 = vdwg.mxu0
    %1925 = vmatprep.subr.mxu0 0.0
    %1926 = vmatpush1.msra.mxu0 %v108
    %1927 = vmatprep.subr.mxu0 0.0
    %1928 = vmatpush1.msra.mxu0 %v109
    %1929 = vmatprep.subr.mxu0 0.0
    %1930 = vmatpush1.msra.mxu0 %v110
    %1931 = vmatprep.subr.mxu0 0.0
    %1932 = vmatpush1.msra.mxu0 %v111
    %1933 = vmatprep.subr.mxu0 0.0
    %1934 = vmatpush1.msra.mxu0 %v112
    %1935 = vmatprep.subr.mxu0 0.0
    %1936 = vmatpush1.msra.mxu0 %v113
    %1937 = vmatprep.subr.mxu0 0.0
    %1938 = vmatpush1.msra.mxu0 %v114
    %1939 = vmatprep.subr.mxu0 0.0
    %1940 = vmatpush1.msra.mxu0 %v115
    %1941 = vmatprep.subr.mxu0 0.0
    %1942 = vmatpush1.msra.mxu0 %v116
    %1943 = vmatprep.subr.mxu0 0.0
    %1944 = vmatpush1.msra.mxu0 %v117
    %1945 = vmatprep.subr.mxu0 0.0
    %1946 = vmatpush1.msra.mxu0 %v118
    %1947 = vmatprep.subr.mxu0 0.0
    %1948 = vmatpush1.msra.mxu0 %v119
    %1949 = vmatprep.subr.mxu0 0.0
    %1950 = vmatpush1.msra.mxu0 %v120
    %1951 = vmatprep.subr.mxu0 0.0
    %1952 = vmatpush1.msra.mxu0 %v121
    %1953 = vmatprep.subr.mxu0 0.0
    %1954 = vmatpush1.msra.mxu0 %v122
    %1955 = vmatprep.subr.mxu0 0.0
    %1956 = vmatpush1.msra.mxu0 %v123
    %1957 = vmatprep.subr.mxu0 0.0
    %1958 = vmatpush1.msra.mxu0 0.0
    %1959 = vmatprep.subr.mxu0 0.0
    %1960 = vmatpush1.msra.mxu0 0.0
    %1961 = vmatprep.subr.mxu0 0.0
    %1962 = vmatpush1.msra.mxu0 0.0
    %1963 = vmatprep.subr.mxu0 0.0
    %1964 = vmatpush1.msra.mxu0 0.0
    %1965 = vmatprep.subr.mxu0 0.0
    %1966 = vmatpush1.msra.mxu0 0.0
    %1967 = vmatprep.subr.mxu0 0.0
    %1968 = vmatpush1.msra.mxu0 0.0
    %1969 = vmatprep.subr.mxu0 0.0
    %1970 = vmatpush1.msra.mxu0 0.0
    %1971 = vmatprep.subr.mxu0 0.0
    %1972 = vmatpush1.msra.mxu0 0.0
    %1973 = vmatprep.subr.mxu0 0.0
    %1974 = vmatpush1.msra.mxu0 0.0
    %1975 = vmatprep.subr.mxu0 0.0
    %1976 = vmatpush1.msra.mxu0 0.0
    %1977 = vmatprep.subr.mxu0 0.0
    %1978 = vmatpush1.msra.mxu0 0.0
    %1979 = vmatprep.subr.mxu0 0.0
    %1980 = vmatpush1.msra.mxu0 0.0
    %1981 = vmatprep.subr.mxu0 0.0
    %1982 = vmatpush1.msra.mxu0 0.0
    %1983 = vmatprep.subr.mxu0 0.0
    %1984 = vmatpush1.msra.mxu0 0.0
    %1985 = vmatprep.subr.mxu0 0.0
    %1986 = vmatpush1.msra.mxu0 0.0
    %1987 = vmatprep.subr.mxu0 0.0
    %1988 = vmatpush1.msra.mxu0 0.0
    %1989 = vmatprep.mubr.f32.mxu0 0.0
    %1990 = vmatmul.mubr.f32.gmra.mrb[0].mxu0 %v1854
    %v1991 = vpop.f32.mrb[0].mxu0
    %v1992 = vadd.f32 %v1922, %v1991
    %v1993 = vpop.f32.mrb[0].mxu0
    %1994 = vdwg.mxu0
    %v1995 = vadd.f32 %v1992, %v158
    %v1996 = vtanh.pop %v1995
    %1997 = vst [vmem:[#allocation11] sm:$0xff] %v1854
    %s1998 = scalar_lea.vmem [#allocation11], 8
    %1999 = vst [vmem:[%s1998] sm:$0xff] %v1996
    %2000 = vmatprep.subr.mxu0 0.0
    %2001 = vmatpush1.msra.mxu0 %v140
    %2002 = vmatprep.subr.mxu0 0.0
    %2003 = vmatpush1.msra.mxu0 %v141
    %2004 = vmatprep.subr.mxu0 0.0
    %2005 = vmatpush1.msra.mxu0 %v142
    %2006 = vmatprep.subr.mxu0 0.0
    %2007 = vmatpush1.msra.mxu0 %v143
    %2008 = vmatprep.subr.mxu0 0.0
    %2009 = vmatpush1.msra.mxu0 %v144
    %2010 = vmatprep.subr.mxu0 0.0
    %2011 = vmatpush1.msra.mxu0 %v145
    %2012 = vmatprep.subr.mxu0 0.0
    %2013 = vmatpush1.msra.mxu0 %v146
    %2014 = vmatprep.subr.mxu0 0.0
    %2015 = vmatpush1.msra.mxu0 %v147
    %2016 = vmatprep.subr.mxu0 0.0
    %2017 = vmatpush1.msra.mxu0 %v148
    %2018 = vmatprep.subr.mxu0 0.0
    %2019 = vmatpush1.msra.mxu0 %v149
    %2020 = vmatprep.subr.mxu0 0.0
    %2021 = vmatpush1.msra.mxu0 %v150
    %2022 = vmatprep.subr.mxu0 0.0
    %2023 = vmatpush1.msra.mxu0 %v151
    %2024 = vmatprep.subr.mxu0 0.0
    %2025 = vmatpush1.msra.mxu0 %v152
    %2026 = vmatprep.subr.mxu0 0.0
    %2027 = vmatpush1.msra.mxu0 %v153
    %2028 = vmatprep.subr.mxu0 0.0
    %2029 = vmatpush1.msra.mxu0 %v154
    %2030 = vmatprep.subr.mxu0 0.0
    %2031 = vmatpush1.msra.mxu0 %v155
    %2032 = vmatprep.subr.mxu0 0.0
    %2033 = vmatpush1.msra.mxu0 0.0
    %2034 = vmatprep.subr.mxu0 0.0
    %2035 = vmatpush1.msra.mxu0 0.0
    %2036 = vmatprep.subr.mxu0 0.0
    %2037 = vmatpush1.msra.mxu0 0.0
    %2038 = vmatprep.subr.mxu0 0.0
    %2039 = vmatpush1.msra.mxu0 0.0
    %2040 = vmatprep.subr.mxu0 0.0
    %2041 = vmatpush1.msra.mxu0 0.0
    %2042 = vmatprep.subr.mxu0 0.0
    %2043 = vmatpush1.msra.mxu0 0.0
    %2044 = vmatprep.subr.mxu0 0.0
    %2045 = vmatpush1.msra.mxu0 0.0
    %2046 = vmatprep.subr.mxu0 0.0
    %2047 = vmatpush1.msra.mxu0 0.0
    %2048 = vmatprep.subr.mxu0 0.0
    %2049 = vmatpush1.msra.mxu0 0.0
    %2050 = vmatprep.subr.mxu0 0.0
    %2051 = vmatpush1.msra.mxu0 0.0
    %2052 = vmatprep.subr.mxu0 0.0
    %2053 = vmatpush1.msra.mxu0 0.0
    %2054 = vmatprep.subr.mxu0 0.0
    %2055 = vmatpush1.msra.mxu0 0.0
    %2056 = vmatprep.subr.mxu0 0.0
    %2057 = vmatpush1.msra.mxu0 0.0
    %2058 = vmatprep.subr.mxu0 0.0
    %2059 = vmatpush1.msra.mxu0 0.0
    %2060 = vmatprep.subr.mxu0 0.0
    %2061 = vmatpush1.msra.mxu0 0.0
    %2062 = vmatprep.subr.mxu0 0.0
    %2063 = vmatpush1.msra.mxu0 0.0
    %2064 = vmatprep.mubr.f32.mxu0 0.0
    %2065 = vmatmul.mubr.f32.gmra.mrb[0].mxu0 %v498
    %v2066 = vpop.f32.mrb[0].mxu0
    %v2067 = vadd.f32 0.0, %v2066
    %v2068 = vpop.f32.mrb[0].mxu0
    %2069 = vmatprep.mubr.f32.mxu0 0.0
    %2070 = vmatmul.mubr.f32.gmra.mrb[0].mxu0 %v712
    %v2071 = vpop.f32.mrb[0].mxu0
    %v2072 = vadd.f32 0.0, %v2071
    %v2073 = vpop.f32.mrb[0].mxu0
    %2074 = vmatprep.mubr.f32.mxu0 0.0
    %2075 = vmatmul.mubr.f32.gmra.mrb[0].mxu0 %v926
    %v2076 = vpop.f32.mrb[0].mxu0
    %v2077 = vadd.f32 0.0, %v2076
    %v2078 = vpop.f32.mrb[0].mxu0
    %2079 = vmatprep.mubr.f32.mxu0 0.0
    %2080 = vmatmul.mubr.f32.gmra.mrb[0].mxu0 %v1140
    %v2081 = vpop.f32.mrb[0].mxu0
    %v2082 = vadd.f32 0.0, %v2081
    %v2083 = vpop.f32.mrb[0].mxu0
    %2084 = vmatprep.mubr.f32.mxu0 0.0
    %2085 = vmatmul.mubr.f32.gmra.mrb[0].mxu0 %v1354
    %v2086 = vpop.f32.mrb[0].mxu0
    %v2087 = vadd.f32 0.0, %v2086
    %v2088 = vpop.f32.mrb[0].mxu0
    %2089 = vmatprep.mubr.f32.mxu0 0.0
    %2090 = vmatmul.mubr.f32.gmra.mrb[0].mxu0 %v1568
    %v2091 = vpop.f32.mrb[0].mxu0
    %v2092 = vadd.f32 0.0, %v2091
    %v2093 = vpop.f32.mrb[0].mxu0
    %2094 = vmatprep.mubr.f32.mxu0 0.0
    %2095 = vmatmul.mubr.f32.gmra.mrb[0].mxu0 %v1782
    %v2096 = vpop.f32.mrb[0].mxu0
    %v2097 = vadd.f32 0.0, %v2096
    %v2098 = vpop.f32.mrb[0].mxu0
    %2099 = vmatprep.mubr.f32.mxu0 0.0
    %2100 = vmatmul.mubr.f32.gmra.mrb[0].mxu0 %v1996
    %v2101 = vpop.f32.mrb[0].mxu0
    %v2102 = vadd.f32 0.0, %v2101
    %v2103 = vpop.f32.mrb[0].mxu0
    %2104 = vdwg.mxu0
    %v2105 = vadd.f32 %v2067, %v160
    %v2106 = vadd.f32 %v2072, %v160
    %v2107 = vadd.f32 %v2077, %v160
    %v2108 = vadd.f32 %v2082, %v160
    %v2109 = vadd.f32 %v2087, %v160
    %v2110 = vadd.f32 %v2092, %v160
    %v2111 = vadd.f32 %v2097, %v160
    %v2112 = vadd.f32 %v2102, %v160
    %2113 = vst [vmem:[#allocation10] sm:$0xff] %v2105
    %2114 = vst [vmem:[#allocation10 + $0x8] sm:$0xff] %v2106
    %2115 = vst [vmem:[#allocation10 + $0x10] sm:$0xff] %v2107
    %2116 = vst [vmem:[#allocation10 + $0x18] sm:$0xff] %v2108
    %2117 = vst [vmem:[#allocation10 + $0x20] sm:$0xff] %v2109
    %2118 = vst [vmem:[#allocation10 + $0x28] sm:$0xff] %v2110
    %2119 = vst [vmem:[#allocation10 + $0x30] sm:$0xff] %v2111
    %2120 = vst [vmem:[#allocation10 + $0x38] sm:$0xff] %v2112
    // Predicated region
    $region34: #{tpu_custom_call.1} parent=1 // pred_check
      _
    $region35: #{tpu_custom_call.1} parent=1 // pred_check_branch
      %2122 = sbr.rel (0) target = $region37
    $region36: #{tpu_custom_call.1} parent=1 // pred_region
      %s2124 = ssub.s32 1024, 1024
      %2125 = vsyncadd [#allocation4], %s2124
      %s2126 = sshll.u32 [#allocation10], 4
      %s2127 = int_to_ptr.vmem [resolvable:$true] %s2126
      %2132 = dma.vmem_to_hbm [thread:$0]  %s2127, 1024, %s4, [#allocation4], 128, 128, 8
    $region37: #{tpu_custom_call.1} parent=1 // pred_fallthru
      _
    // Predicated region
    $region38: #{tpu_custom_call.1} parent=1 // pred_check
      _
    $region39: #{tpu_custom_call.1} parent=1 // pred_check_branch
      %2134 = sbr.rel (0) target = $region41
    $region40: #{tpu_custom_call.1} parent=1 // pred_region
      %s2136 = ssub.s32 256, 256
      %2137 = vsyncadd [#allocation12], %s2136
      %s2138 = sshll.u32 [#allocation11], 4
      %s2139 = int_to_ptr.vmem [resolvable:$true] %s2138
      %2144 = dma.vmem_to_hbm [thread:$0]  %s2139, 256, %s5, [#allocation12], 128, 128, 8
    $region41: #{tpu_custom_call.1} parent=1 // pred_fallthru
      _
    // Predicated region
    $region42: #{tpu_custom_call.1} parent=1 // pred_check
      _
    $region43: #{tpu_custom_call.1} parent=1 // pred_check_branch
      %2146 = sbr.rel (0) target = $region45
    $region44: #{tpu_custom_call.1} parent=1 // pred_region
      %2147 = dma.done [#allocation4], 1024
    $region45: #{tpu_custom_call.1} parent=1 // pred_fallthru
      _
    // Predicated region
    $region46: #{tpu_custom_call.1} parent=1 // pred_check
      _
    $region47: #{tpu_custom_call.1} parent=1 // pred_check_branch
      %2149 = sbr.rel (0) target = $region49
    $region48: #{tpu_custom_call.1} parent=1 // pred_region
      %2150 = dma.done [#allocation12], 256
    $region49: #{tpu_custom_call.1} parent=1 // pred_fallthru
      _
    %2151 = vsyncpa [#allocation3], 1
    %2152 = vsyncpa [#allocation6], 1
    %2153 = vsyncpa [#allocation9], 1
    %2154 = vsyncpa [#allocation4], 1
    %2155 = vsyncpa [#allocation12], 1

</llo_original>
